<compile_context>
chip_gen: v7x
topology: tpu7x:2x2x1
jax: 0.10.0
libtpu: 0.0.40
codegen_flags: <defaults>
</compile_context>

<pallas_src>
import functools

import jax
import jax.numpy as jnp
from jax import lax
from jax.experimental import pallas as pl
from jax.experimental.pallas import tpu as pltpu

EPS = 1e-5          # BatchNorm2d default eps
NEG_SLOPE = 0.2     # LeakyReLU slope


def _leaky_relu(x):
    return jnp.where(x >= 0, x, NEG_SLOPE * x)


# ---------------------------------------------------------------------------
# Fused kernel:  down conv (1 matmul)  ->  ReLU  ->  transposed conv
#                (1 gather + 2 wide matmuls)  +  per-step BN sum / sumsq.
# ---------------------------------------------------------------------------
def unet_inner_kernel(xcol_ref, wd_ref, wu0_ref, wu1_ref,
                      y_ref, ssum_ref, ssq_ref, hpad_ref,
                      *, nb, oh, ow, inner_nc, outer_nc):
    # xcol_ref : (nb, oh*ow, 16*cin) bf16  im2col'd, LeakyReLU-activated input
    # wd_ref   : (16*cin, inner_nc)  bf16  down-conv weight
    # wu*_ref  : (6*inner_nc, 2*outer_nc) bf16  up-conv weight (sub-pixel rows a=0/1)
    # y_ref    : (nb, oh*ow, 4*outer_nc) f32   pre-BN up-conv output, (a,b,co) lanes
    # ssum_ref : (1, 1, 4*outer_nc) f32   per-grid-step partial sums (BN)
    # ssq_ref  : (1, 1, 4*outer_nc) f32
    # hpad_ref : VMEM scratch (nb, oh+2, ow+2, inner_nc) bf16
    ms = oh * ow
    rows = nb * ms
    f32 = jnp.float32

    # ---- down path: single matmul over the pre-activated im2col input ----------
    xcol = xcol_ref[...].reshape(rows, xcol_ref.shape[-1])
    h = jnp.dot(xcol, wd_ref[...], preferred_element_type=f32)
    h = jnp.maximum(h, 0.0)                                   # uprelu, f32 on VPU

    # ---- padded inner activation stays entirely in VMEM ------------------------
    # Zero only the 1-pixel border (the interior is fully overwritten each step;
    # zeroing once under pl.when(program_id==0) would be wrong with a
    # megacore-parallel grid, and full zeroing wastes the scarce store slot).
    zr = jnp.zeros((nb, 1, ow + 2, inner_nc), hpad_ref.dtype)
    zc = jnp.zeros((nb, oh + 2, 1, inner_nc), hpad_ref.dtype)
    hpad_ref[:, pl.ds(0, 1), :, :] = zr
    hpad_ref[:, pl.ds(oh + 1, 1), :, :] = zr
    hpad_ref[:, :, pl.ds(0, 1), :] = zc
    hpad_ref[:, :, pl.ds(ow + 1, 1), :] = zc
    hpad_ref[:, pl.ds(1, oh), pl.ds(1, ow), :] = (
        h.astype(hpad_ref.dtype).reshape(nb, oh, ow, inner_nc))

    # ---- transposed conv: ONE consolidated 9-tap gather ------------------------
    taps = []
    for du in range(3):
        for dv in range(3):
            win = hpad_ref[:, pl.ds(du, oh), pl.ds(dv, ow), :]
            taps.append(win.reshape(rows, inner_nc))
    hcol = jnp.concatenate(taps, axis=-1)                     # (rows, 9*inner_nc)

    # Sub-pixel output row a=0 only uses taps du in {0,1}; a=1 only du in {1,2}.
    # The complementary du blocks of the packed weight are exactly zero, so two
    # K=6*inner_nc matmuls cover all non-zero work.
    out_a0 = jnp.dot(hcol[:, : 6 * inner_nc], wu0_ref[...],
                     preferred_element_type=f32)              # (rows, 2*outer_nc)
    out_a1 = jnp.dot(hcol[:, 3 * inner_nc:], wu1_ref[...],
                     preferred_element_type=f32)              # (rows, 2*outer_nc)
    acc = jnp.concatenate([out_a0, out_a1], axis=-1)          # (rows, 4*outer_nc)

    y_ref[...] = acc.reshape(nb, ms, 4 * outer_nc)
    ssum_ref[...] = jnp.sum(acc, axis=0)[None, None, :]
    ssq_ref[...] = jnp.sum(acc * acc, axis=0)[None, None, :]


# ---------------------------------------------------------------------------
# Wrapper helpers
# ---------------------------------------------------------------------------
def _pick_batch_block(n, ms):
    """Images per grid step: fill the MXU M axis when spatial is tiny, but keep
    >= 2 grid steps (megacore on v7x) and bound rows per step."""
    nb = 1
    for d in range(1, n + 1):
        if n % d:
            continue
        if d * ms > 4096:
            break
        if n >= 2 and n // d < 2:
            break
        nb = d
        if d * ms >= 256:
            break
    return nb


def _vmem_limit(nb, ms, cin, inner_nc, outer_nc, oh, ow):
    rows = nb * ms
    est = 0
    est += 2 * rows * 16 * cin * 2                       # xcol block (bf16, dbl buf)
    est += 2 * rows * 4 * outer_nc * 4                   # y block (f32, dbl buf)
    est += 2 * 16 * cin * inner_nc * 2                   # wd
    est += 2 * 2 * 6 * inner_nc * 2 * outer_nc * 2       # wu_a0 + wu_a1
    est += nb * (oh + 2) * (ow + 2) * inner_nc * 2       # hpad scratch
    est += rows * 9 * inner_nc * 2                       # hcol temporary
    est += 2 * rows * 4 * outer_nc * 4                   # acc + matmul outputs
    return int(min(max(2 * est, 24 * 1024 * 1024), 56 * 1024 * 1024))


# ---------------------------------------------------------------------------
# Wrapper
# ---------------------------------------------------------------------------
def unet_skip_block_innermost(x_nchw, w_down, w_up, gamma, beta):
    """Forward of the innermost UnetSkipConnectionBlock (training-mode BatchNorm).

    x_nchw : (N, input_nc, H, W)
    w_down : (inner_nc, input_nc, 4, 4)   Conv2d weight (OIHW)
    w_up   : (inner_nc, outer_nc, 4, 4)   ConvTranspose2d weight (IOHW)
    gamma, beta : (outer_nc,)             BatchNorm2d affine parameters
    returns (N, input_nc + outer_nc, H, W)
    """
    N, cin, H, W = x_nchw.shape
    inner_nc = w_down.shape[0]
    outer_nc = w_up.shape[1]
    # Hard-coded k=4 / s=2 / p=1 sub-pixel decomposition: fail loudly otherwise.
    assert w_down.shape == (inner_nc, cin, 4, 4), "down conv must be 4x4"
    assert w_up.shape == (inner_nc, outer_nc, 4, 4), "up conv must be 4x4"
    assert H % 2 == 0 and W % 2 == 0, "k=4/s=2/p=1 requires even H, W"
    oh, ow = H // 2, W // 2
    ms = oh * ow
    f32, bf16 = jnp.float32, jnp.bfloat16
    x = x_nchw.astype(f32)

    # ---- layout plumbing (single XLA-fused pass): LeakyReLU + pad + im2col -----
    xa = _leaky_relu(x)                                   # f32 elementwise (v5e-safe)
    x_nhwc = jnp.transpose(xa, (0, 2, 3, 1))
    xp = jnp.pad(x_nhwc, ((0, 0), (1, 1), (1, 1), (0, 0)))
    # padded row = 2*R + p, padded col = 2*S + q
    xs = xp.reshape(N, oh + 1, 2, ow + 1, 2, cin).transpose(0, 1, 3, 2, 4, 5)
    views = [xs[:, a:a + oh, b:b + ow] for a in (0, 1) for b in (0, 1)]
    xcol = jnp.stack(views, axis=3).reshape(N, ms, 16 * cin)   # K order (a,b,p,q,ci)
    xcol = xcol.astype(bf16)

    # ---- down-conv weight -> (16*cin, inner_nc), rows in (a,b,p,q,ci) order ----
    wd = jnp.transpose(w_down.astype(f32), (2, 3, 1, 0))       # (kh, kw, ci, k)
    wd = wd.reshape(2, 2, 2, 2, cin, inner_nc)                 # (a, p, b, q, ci, k)
    wd = jnp.transpose(wd, (0, 2, 1, 3, 4, 5)).reshape(16 * cin, inner_nc)
    wd = wd.astype(bf16)

    # ---- transposed-conv weight: 9 taps x (a,b,co) columns, then drop the
    #      all-zero du blocks by splitting on the output sub-pixel row `a` -------
    wu_t = w_up.astype(f32)
    tap_list = []
    for du in range(3):
        for dv in range(3):
            blocks = []
            for a in (0, 1):
                for b in (0, 1):
                    kh = 3 + a - 2 * du
                    kw = 3 + b - 2 * dv
                    if 0 <= kh <= 3 and 0 <= kw <= 3:
                        blocks.append(wu_t[:, :, kh, kw])
                    else:
                        blocks.append(jnp.zeros((inner_nc, outer_nc), f32))
            tap_list.append(jnp.concatenate(blocks, axis=1))   # (inner, 4*outer)
    wu_flat = jnp.stack(tap_list, axis=0).reshape(9 * inner_nc, 4 * outer_nc)
    # a=0 uses taps du in {0,1}  -> rows [0, 6*inner), cols [0, 2*outer)
    # a=1 uses taps du in {1,2}  -> rows [3*inner, 9*inner), cols [2*outer, 4*outer)
    wu_a0 = wu_flat[: 6 * inner_nc, : 2 * outer_nc].astype(bf16)
    wu_a1 = wu_flat[3 * inner_nc:, 2 * outer_nc:].astype(bf16)

    # ---- fused kernel: down+up conv + BN partial statistics --------------------
    nb = _pick_batch_block(N, ms)
    grid_n = N // nb
    kern = functools.partial(unet_inner_kernel, nb=nb, oh=oh, ow=ow,
                             inner_nc=inner_nc, outer_nc=outer_nc)
    y, ssum, ssq = pl.pallas_call(
        kern,
        out_shape=(
            jax.ShapeDtypeStruct((N, ms, 4 * outer_nc), f32),
            jax.ShapeDtypeStruct((grid_n, 1, 4 * outer_nc), f32),
            jax.ShapeDtypeStruct((grid_n, 1, 4 * outer_nc), f32),
        ),
        grid_spec=pltpu.PrefetchScalarGridSpec(
            num_scalar_prefetch=0,
            grid=(grid_n,),
            in_specs=[
                pl.BlockSpec((nb, ms, 16 * cin), lambda g: (g, 0, 0)),
                pl.BlockSpec((16 * cin, inner_nc), lambda g: (0, 0)),
                pl.BlockSpec((6 * inner_nc, 2 * outer_nc), lambda g: (0, 0)),
                pl.BlockSpec((6 * inner_nc, 2 * outer_nc), lambda g: (0, 0)),
            ],
            out_specs=[
                pl.BlockSpec((nb, ms, 4 * outer_nc), lambda g: (g, 0, 0)),
                pl.BlockSpec((1, 1, 4 * outer_nc), lambda g: (g, 0, 0)),
                pl.BlockSpec((1, 1, 4 * outer_nc), lambda g: (g, 0, 0)),
            ],
            scratch_shapes=[pltpu.VMEM((nb, oh + 2, ow + 2, inner_nc), bf16)],
        ),
        compiler_params=pltpu.CompilerParams(
            dimension_semantics=("parallel",),
            vmem_limit_bytes=_vmem_limit(nb, ms, cin, inner_nc, outer_nc, oh, ow)),
    )(xcol, wd, wu_a0, wu_a1)

    # ---- hoisted BatchNorm scale/shift (batch stats, biased var, clamped) ------
    cnt = jnp.float32(N * H * W)
    s = jnp.sum(ssum.reshape(grid_n, 4, outer_nc), axis=(0, 1))
    q = jnp.sum(ssq.reshape(grid_n, 4, outer_nc), axis=(0, 1))
    mean = s / cnt
    var = jnp.maximum(q / cnt - mean * mean, 0.0)   # clamp: no rsqrt of negatives
    scale = gamma.astype(f32) * lax.rsqrt(var + EPS)
    shift = beta.astype(f32) - mean * scale
    scale4 = jnp.tile(scale, 4)                      # (4*outer_nc,), (a,b,co) order
    shift4 = jnp.tile(shift, 4)

    # ---- BN affine + depth-to-space + NCHW + skip concat ------------------------
    # Pure elementwise + layout: XLA fuses the affine into the transpose, so y
    # only makes one more HBM pass (the innermost block's NCHW slab is far too
    # lane-narrow to be worth a Pallas store kernel).
    y_bn = y * scale4[None, None, :] + shift4[None, None, :]
    y6 = y_bn.reshape(N, oh, ow, 2, 2, outer_nc)
    y_nhwc = jnp.transpose(y6, (0, 1, 3, 2, 4, 5)).reshape(N, H, W, outer_nc)
    y_nchw = jnp.transpose(y_nhwc, (0, 3, 1, 2))
    return jnp.concatenate([x, y_nchw], axis=1)


# ---------------------------------------------------------------------------
# Pure-JAX reference (independent: lax convolutions) for correctness check
# ---------------------------------------------------------------------------
def reference(x_nchw, w_down, w_up, gamma, beta):
    x = x_nchw.astype(jnp.float32)
    xr = _leaky_relu(x)
    h = lax.conv_general_dilated(
        xr, w_down, window_strides=(2, 2), padding=((1, 1), (1, 1)),
        dimension_numbers=("NCHW", "OIHW", "NCHW"),
        precision=lax.Precision.HIGHEST)
    h = jnp.maximum(h, 0.0)
    # ConvTranspose2d(k=4, s=2, p=1) == lhs-dilated conv with flipped, transposed weight
    w_flip = jnp.transpose(w_up, (1, 0, 2, 3))[:, :, ::-1, ::-1]
    y = lax.conv_general_dilated(
        h, w_flip, window_strides=(1, 1), padding=((2, 2), (2, 2)),
        lhs_dilation=(2, 2),
        dimension_numbers=("NCHW", "OIHW", "NCHW"),
        precision=lax.Precision.HIGHEST)
    mean = jnp.mean(y, axis=(0, 2, 3), keepdims=True)
    var = jnp.var(y, axis=(0, 2, 3), keepdims=True)      # biased, like BN training
    yn = (y - mean) / jnp.sqrt(var + EPS) * gamma[None, :, None, None] \
         + beta[None, :, None, None]
    return jnp.concatenate([x, yn], axis=1)


if __name__ == "__main__":
    key = jax.random.PRNGKey(0)
    ks = jax.random.split(key, 5)

    # small shapes consistent with the module: innermost block, input_nc = outer_nc = 4
    N, outer_nc, inner_nc, H, W = 2, 4, 8, 16, 16

    x = jax.random.normal(ks[0], (N, outer_nc, H, W), jnp.float32)
    w_down = 0.1 * jax.random.normal(ks[1], (inner_nc, outer_nc, 4, 4), jnp.float32)
    w_up = 0.1 * jax.random.normal(ks[2], (inner_nc, outer_nc, 4, 4), jnp.float32)
    gamma = 1.0 + 0.1 * jax.random.normal(ks[3], (outer_nc,), jnp.float32)
    beta = 0.1 * jax.random.normal(ks[4], (outer_nc,), jnp.float32)

    out = jax.block_until_ready(
        unet_skip_block_innermost(x, w_down, w_up, gamma, beta))
    ref = jax.block_until_ready(reference(x, w_down, w_up, gamma, beta))

    assert out.shape == (N, 2 * outer_nc, H, W), out.shape
    err = float(jnp.max(jnp.abs(out - ref)))
    # bf16 matmul inputs (f32 accumulation): allow a few e-2 of absolute error.
    assert jnp.allclose(out, ref, atol=5e-2, rtol=5e-2), f"max abs err = {err}"

    print("KERNEL_OK")
</pallas_src>

<mosaic_0001>
module attributes {stable_mosaic.version = 11 : i64} {
  func.func @unet_inner_kernel(%arg0: i32, %arg1: memref<1x64x64xbf16, #tpu.memory_space<vmem>>, %arg2: memref<64x8xbf16, #tpu.memory_space<vmem>>, %arg3: memref<48x8xbf16, #tpu.memory_space<vmem>>, %arg4: memref<48x8xbf16, #tpu.memory_space<vmem>>, %arg5: memref<1x64x16xf32, #tpu.memory_space<vmem>>, %arg6: memref<1x1x16xf32, #tpu.memory_space<vmem>>, %arg7: memref<1x1x16xf32, #tpu.memory_space<vmem>>, %arg8: memref<1x10x10x8xbf16, #tpu.memory_space<vmem>>) attributes {dimension_semantics = [#tpu.dimension_semantics<parallel>], iteration_bounds = array<i64: 2>, scalar_prefetch = 0 : i64, scratch_operands = 1 : i64, tpu.core_type = #tpu.core_type<tc>, window_params = [{transform_indices = @transform_0, window_bounds = array<i64: 1, 64, 64>}, {pipeline_mode = #tpu.pipeline_mode<synchronous>, transform_indices = @transform_1, window_bounds = array<i64: 64, 8>}, {pipeline_mode = #tpu.pipeline_mode<synchronous>, transform_indices = @transform_2, window_bounds = array<i64: 48, 8>}, {pipeline_mode = #tpu.pipeline_mode<synchronous>, transform_indices = @transform_3, window_bounds = array<i64: 48, 8>}, {transform_indices = @transform_4, window_bounds = array<i64: 1, 64, 16>}, {transform_indices = @transform_5, window_bounds = array<i64: 1, 1, 16>}, {transform_indices = @transform_6, window_bounds = array<i64: 1, 1, 16>}]} {
    %c0 = arith.constant 0 : index
    %c0_0 = arith.constant 0 : index
    %c0_1 = arith.constant 0 : index
    %0 = vector.load %arg1[%c0, %c0_0, %c0_1] : memref<1x64x64xbf16, #tpu.memory_space<vmem>>, vector<1x64x64xbf16>
    %1 = vector.shape_cast %0 : vector<1x64x64xbf16> to vector<64x64xbf16>
    %c0_2 = arith.constant 0 : index
    %c0_3 = arith.constant 0 : index
    %2 = vector.load %arg2[%c0_2, %c0_3] : memref<64x8xbf16, #tpu.memory_space<vmem>>, vector<64x8xbf16>
    %cst = arith.constant dense<0.000000e+00> : vector<64x8xf32>
    %3 = tpu.matmul %1, %2, %cst {dimension_numbers = #tpu.dot_dimension_numbers<[1], [0], [0], [1], [0, 0, 1, 1], [], []>} : vector<64x64xbf16>, vector<64x8xbf16>, vector<64x8xf32> -> vector<64x8xf32>
    %cst_4 = arith.constant 0.000000e+00 : f32
    %4 = vector.broadcast %cst_4 : f32 to vector<64x8xf32>
    %5 = arith.maximumf %3, %4 : vector<64x8xf32>
    %cst_5 = arith.constant 0.000000e+00 : bf16
    %6 = vector.broadcast %cst_5 : bf16 to vector<1x1x10x8xbf16>
    %cst_6 = arith.constant 0.000000e+00 : bf16
    %7 = vector.broadcast %cst_6 : bf16 to vector<1x10x1x8xbf16>
    %c0_7 = arith.constant 0 : index
    %c0_8 = arith.constant 0 : index
    %c0_9 = arith.constant 0 : index
    %c0_10 = arith.constant 0 : index
    %8 = vector.load %arg8[%c0_7, %c0_8, %c0_9, %c0_10] : memref<1x10x10x8xbf16, #tpu.memory_space<vmem>>, vector<1x1x10x8xbf16>
    tpu.vector_store %arg8[%c0_7, %c0_8, %c0_9, %c0_10], %6 {strides = array<i32>} : memref<1x10x10x8xbf16, #tpu.memory_space<vmem>>, vector<1x1x10x8xbf16>,
    %c0_11 = arith.constant 0 : index
    %c9 = arith.constant 9 : index
    %c0_12 = arith.constant 0 : index
    %c0_13 = arith.constant 0 : index
    %9 = vector.load %arg8[%c0_11, %c9, %c0_12, %c0_13] : memref<1x10x10x8xbf16, #tpu.memory_space<vmem>>, vector<1x1x10x8xbf16>
    tpu.vector_store %arg8[%c0_11, %c9, %c0_12, %c0_13], %6 {strides = array<i32>} : memref<1x10x10x8xbf16, #tpu.memory_space<vmem>>, vector<1x1x10x8xbf16>,
    %c0_14 = arith.constant 0 : index
    %c0_15 = arith.constant 0 : index
    %c0_16 = arith.constant 0 : index
    %c0_17 = arith.constant 0 : index
    %10 = vector.load %arg8[%c0_14, %c0_15, %c0_16, %c0_17] : memref<1x10x10x8xbf16, #tpu.memory_space<vmem>>, vector<1x10x1x8xbf16>
    tpu.vector_store %arg8[%c0_14, %c0_15, %c0_16, %c0_17], %7 {strides = array<i32>} : memref<1x10x10x8xbf16, #tpu.memory_space<vmem>>, vector<1x10x1x8xbf16>,
    %c0_18 = arith.constant 0 : index
    %c0_19 = arith.constant 0 : index
    %c9_20 = arith.constant 9 : index
    %c0_21 = arith.constant 0 : index
    %11 = vector.load %arg8[%c0_18, %c0_19, %c9_20, %c0_21] : memref<1x10x10x8xbf16, #tpu.memory_space<vmem>>, vector<1x10x1x8xbf16>
    tpu.vector_store %arg8[%c0_18, %c0_19, %c9_20, %c0_21], %7 {strides = array<i32>} : memref<1x10x10x8xbf16, #tpu.memory_space<vmem>>, vector<1x10x1x8xbf16>,
    %12 = arith.truncf %5 : vector<64x8xf32> to vector<64x8xbf16>
    %13 = vector.shape_cast %12 : vector<64x8xbf16> to vector<1x8x8x8xbf16>
    %c0_22 = arith.constant 0 : index
    %c1 = arith.constant 1 : index
    %c1_23 = arith.constant 1 : index
    %c0_24 = arith.constant 0 : index
    %14 = vector.load %arg8[%c0_22, %c1, %c1_23, %c0_24] : memref<1x10x10x8xbf16, #tpu.memory_space<vmem>>, vector<1x8x8x8xbf16>
    tpu.vector_store %arg8[%c0_22, %c1, %c1_23, %c0_24], %13 {strides = array<i32>} : memref<1x10x10x8xbf16, #tpu.memory_space<vmem>>, vector<1x8x8x8xbf16>,
    %c0_25 = arith.constant 0 : index
    %c0_26 = arith.constant 0 : index
    %c0_27 = arith.constant 0 : index
    %c0_28 = arith.constant 0 : index
    %15 = vector.load %arg8[%c0_25, %c0_26, %c0_27, %c0_28] : memref<1x10x10x8xbf16, #tpu.memory_space<vmem>>, vector<1x8x8x8xbf16>
    %16 = vector.shape_cast %15 : vector<1x8x8x8xbf16> to vector<64x8xbf16>
    %c0_29 = arith.constant 0 : index
    %c0_30 = arith.constant 0 : index
    %c1_31 = arith.constant 1 : index
    %c0_32 = arith.constant 0 : index
    %17 = vector.load %arg8[%c0_29, %c0_30, %c1_31, %c0_32] : memref<1x10x10x8xbf16, #tpu.memory_space<vmem>>, vector<1x8x8x8xbf16>
    %18 = vector.shape_cast %17 : vector<1x8x8x8xbf16> to vector<64x8xbf16>
    %c0_33 = arith.constant 0 : index
    %c0_34 = arith.constant 0 : index
    %c2 = arith.constant 2 : index
    %c0_35 = arith.constant 0 : index
    %19 = vector.load %arg8[%c0_33, %c0_34, %c2, %c0_35] : memref<1x10x10x8xbf16, #tpu.memory_space<vmem>>, vector<1x8x8x8xbf16>
    %20 = vector.shape_cast %19 : vector<1x8x8x8xbf16> to vector<64x8xbf16>
    %c0_36 = arith.constant 0 : index
    %c1_37 = arith.constant 1 : index
    %c0_38 = arith.constant 0 : index
    %c0_39 = arith.constant 0 : index
    %21 = vector.load %arg8[%c0_36, %c1_37, %c0_38, %c0_39] : memref<1x10x10x8xbf16, #tpu.memory_space<vmem>>, vector<1x8x8x8xbf16>
    %22 = vector.shape_cast %21 : vector<1x8x8x8xbf16> to vector<64x8xbf16>
    %c0_40 = arith.constant 0 : index
    %c1_41 = arith.constant 1 : index
    %c1_42 = arith.constant 1 : index
    %c0_43 = arith.constant 0 : index
    %23 = vector.load %arg8[%c0_40, %c1_41, %c1_42, %c0_43] : memref<1x10x10x8xbf16, #tpu.memory_space<vmem>>, vector<1x8x8x8xbf16>
    %24 = vector.shape_cast %23 : vector<1x8x8x8xbf16> to vector<64x8xbf16>
    %c0_44 = arith.constant 0 : index
    %c1_45 = arith.constant 1 : index
    %c2_46 = arith.constant 2 : index
    %c0_47 = arith.constant 0 : index
    %25 = vector.load %arg8[%c0_44, %c1_45, %c2_46, %c0_47] : memref<1x10x10x8xbf16, #tpu.memory_space<vmem>>, vector<1x8x8x8xbf16>
    %26 = vector.shape_cast %25 : vector<1x8x8x8xbf16> to vector<64x8xbf16>
    %c0_48 = arith.constant 0 : index
    %c2_49 = arith.constant 2 : index
    %c0_50 = arith.constant 0 : index
    %c0_51 = arith.constant 0 : index
    %27 = vector.load %arg8[%c0_48, %c2_49, %c0_50, %c0_51] : memref<1x10x10x8xbf16, #tpu.memory_space<vmem>>, vector<1x8x8x8xbf16>
    %28 = vector.shape_cast %27 : vector<1x8x8x8xbf16> to vector<64x8xbf16>
    %c0_52 = arith.constant 0 : index
    %c2_53 = arith.constant 2 : index
    %c1_54 = arith.constant 1 : index
    %c0_55 = arith.constant 0 : index
    %29 = vector.load %arg8[%c0_52, %c2_53, %c1_54, %c0_55] : memref<1x10x10x8xbf16, #tpu.memory_space<vmem>>, vector<1x8x8x8xbf16>
    %30 = vector.shape_cast %29 : vector<1x8x8x8xbf16> to vector<64x8xbf16>
    %c0_56 = arith.constant 0 : index
    %c2_57 = arith.constant 2 : index
    %c2_58 = arith.constant 2 : index
    %c0_59 = arith.constant 0 : index
    %31 = vector.load %arg8[%c0_56, %c2_57, %c2_58, %c0_59] : memref<1x10x10x8xbf16, #tpu.memory_space<vmem>>, vector<1x8x8x8xbf16>
    %32 = vector.shape_cast %31 : vector<1x8x8x8xbf16> to vector<64x8xbf16>
    %33 = tpu.concatenate %16, %18, %20, %22, %24, %26, %28, %30, %32 in 1 : vector<64x8xbf16>, vector<64x8xbf16>, vector<64x8xbf16>, vector<64x8xbf16>, vector<64x8xbf16>, vector<64x8xbf16>, vector<64x8xbf16>, vector<64x8xbf16>, vector<64x8xbf16> -> vector<64x72xbf16>
    %34 = vector.extract_strided_slice %33 {offsets = [0, 0], sizes = [64, 48], strides = [1, 1]} : vector<64x72xbf16> to vector<64x48xbf16>
    %c0_60 = arith.constant 0 : index
    %c0_61 = arith.constant 0 : index
    %35 = vector.load %arg3[%c0_60, %c0_61] : memref<48x8xbf16, #tpu.memory_space<vmem>>, vector<48x8xbf16>
    %cst_62 = arith.constant dense<0.000000e+00> : vector<64x8xf32>
    %36 = tpu.matmul %34, %35, %cst_62 {dimension_numbers = #tpu.dot_dimension_numbers<[1], [0], [0], [1], [0, 0, 1, 1], [], []>} : vector<64x48xbf16>, vector<48x8xbf16>, vector<64x8xf32> -> vector<64x8xf32>
    %37 = vector.extract_strided_slice %33 {offsets = [0, 24], sizes = [64, 48], strides = [1, 1]} : vector<64x72xbf16> to vector<64x48xbf16>
    %c0_63 = arith.constant 0 : index
    %c0_64 = arith.constant 0 : index
    %38 = vector.load %arg4[%c0_63, %c0_64] : memref<48x8xbf16, #tpu.memory_space<vmem>>, vector<48x8xbf16>
    %cst_65 = arith.constant dense<0.000000e+00> : vector<64x8xf32>
    %39 = tpu.matmul %37, %38, %cst_65 {dimension_numbers = #tpu.dot_dimension_numbers<[1], [0], [0], [1], [0, 0, 1, 1], [], []>} : vector<64x48xbf16>, vector<48x8xbf16>, vector<64x8xf32> -> vector<64x8xf32>
    %40 = tpu.concatenate %36, %39 in 1 : vector<64x8xf32>, vector<64x8xf32> -> vector<64x16xf32>
    %41 = vector.shape_cast %40 : vector<64x16xf32> to vector<1x64x16xf32>
    %c0_66 = arith.constant 0 : index
    %c0_67 = arith.constant 0 : index
    %c0_68 = arith.constant 0 : index
    %42 = vector.load %arg5[%c0_66, %c0_67, %c0_68] : memref<1x64x16xf32, #tpu.memory_space<vmem>>, vector<1x64x16xf32>
    tpu.vector_store %arg5[%c0_66, %c0_67, %c0_68], %41 {strides = array<i32>} : memref<1x64x16xf32, #tpu.memory_space<vmem>>, vector<1x64x16xf32>,
    %cst_69 = arith.constant dense<0.000000e+00> : vector<16xf32>
    %43 = vector.multi_reduction <add>, %40, %cst_69 [0] : vector<64x16xf32> to vector<16xf32>
    %44 = vector.shape_cast %43 : vector<16xf32> to vector<1x1x16xf32>
    %c0_70 = arith.constant 0 : index
    %c0_71 = arith.constant 0 : index
    %c0_72 = arith.constant 0 : index
    %45 = vector.load %arg6[%c0_70, %c0_71, %c0_72] : memref<1x1x16xf32, #tpu.memory_space<vmem>>, vector<1x1x16xf32>
    tpu.vector_store %arg6[%c0_70, %c0_71, %c0_72], %44 {strides = array<i32>} : memref<1x1x16xf32, #tpu.memory_space<vmem>>, vector<1x1x16xf32>,
    %46 = arith.mulf %40, %40 : vector<64x16xf32>
    %cst_73 = arith.constant dense<0.000000e+00> : vector<16xf32>
    %47 = vector.multi_reduction <add>, %46, %cst_73 [0] : vector<64x16xf32> to vector<16xf32>
    %48 = vector.shape_cast %47 : vector<16xf32> to vector<1x1x16xf32>
    %c0_74 = arith.constant 0 : index
    %c0_75 = arith.constant 0 : index
    %c0_76 = arith.constant 0 : index
    %49 = vector.load %arg7[%c0_74, %c0_75, %c0_76] : memref<1x1x16xf32, #tpu.memory_space<vmem>>, vector<1x1x16xf32>
    tpu.vector_store %arg7[%c0_74, %c0_75, %c0_76], %48 {strides = array<i32>} : memref<1x1x16xf32, #tpu.memory_space<vmem>>, vector<1x1x16xf32>,
    return
  }
  func.func @transform_0(%arg0: i32) -> (i32, i32, i32) {
    %c0_i32 = arith.constant 0 : i32
    %c0_i32_0 = arith.constant 0 : i32
    %c0_i32_1 = arith.constant 0 : i32
    return %arg0, %c0_i32, %c0_i32_0 : i32, i32, i32
  }
  func.func @transform_1(%arg0: i32) -> (i32, i32) {
    %c0_i32 = arith.constant 0 : i32
    %c0_i32_0 = arith.constant 0 : i32
    %c0_i32_1 = arith.constant 0 : i32
    return %c0_i32, %c0_i32_0 : i32, i32
  }
  func.func @transform_2(%arg0: i32) -> (i32, i32) {
    %c0_i32 = arith.constant 0 : i32
    %c0_i32_0 = arith.constant 0 : i32
    %c0_i32_1 = arith.constant 0 : i32
    return %c0_i32, %c0_i32_0 : i32, i32
  }
  func.func @transform_3(%arg0: i32) -> (i32, i32) {
    %c0_i32 = arith.constant 0 : i32
    %c0_i32_0 = arith.constant 0 : i32
    %c0_i32_1 = arith.constant 0 : i32
    return %c0_i32, %c0_i32_0 : i32, i32
  }
  func.func @transform_4(%arg0: i32) -> (i32, i32, i32) {
    %c0_i32 = arith.constant 0 : i32
    %c0_i32_0 = arith.constant 0 : i32
    %c0_i32_1 = arith.constant 0 : i32
    return %arg0, %c0_i32, %c0_i32_0 : i32, i32, i32
  }
  func.func @transform_5(%arg0: i32) -> (i32, i32, i32) {
    %c0_i32 = arith.constant 0 : i32
    %c0_i32_0 = arith.constant 0 : i32
    %c0_i32_1 = arith.constant 0 : i32
    return %arg0, %c0_i32, %c0_i32_0 : i32, i32, i32
  }
  func.func @transform_6(%arg0: i32) -> (i32, i32, i32) {
    %c0_i32 = arith.constant 0 : i32
    %c0_i32_0 = arith.constant 0 : i32
    %c0_i32_1 = arith.constant 0 : i32
    return %arg0, %c0_i32, %c0_i32_0 : i32, i32, i32
  }
}

</mosaic_0001>

<llo_original>
// kernel: tpu_custom_call.1
$region0: #{tpu_custom_call.1}
  #allocation0 [shape = 'u32[]', space=smem, size = 0x4, offset = 0x4, fixed_abs, tag = 'smem constant byte address 0x4 - core index']
  #allocation1 [shape = 'u32[144,128]{1,0:T(1,128)}', space=vmem, size = 0x12000, scoped, tag = 'internal scratch']
  #allocation2 [shape = 'bf16[1,10,10,8]{3,2,1,0:T(8,128)(2,1)}', space=vmem, size = 0xa000, scoped, tag = 'scratch operand']
  %s0 = inlined_call_operand.vmem [shape: bf16[2,64,64], index: 0, kind: input, shape index: {}]
  %s1 = inlined_call_operand.vmem [shape: bf16[64,8], index: 1, kind: input, shape index: {}]
  %s2 = inlined_call_operand.vmem [shape: bf16[48,8], index: 2, kind: input, shape index: {}]
  %s3 = inlined_call_operand.vmem [shape: bf16[48,8], index: 3, kind: input, shape index: {}]
  %s4 = inlined_call_operand.vmem [shape: f32[2,64,16], index: 4, kind: output, shape index: {0}]
  %s5 = inlined_call_operand.hbm [shape: f32[2,1,16], index: 5, kind: output, shape index: {1}]
  %s6 = inlined_call_operand.hbm [shape: f32[2,1,16], index: 6, kind: output, shape index: {2}]
  %7 = xla_tuple %s4, %s5, %s6
  %s8 = sld [smem:[#allocation0]]
  $region65: #{tpu_custom_call.1} parent=0
    _
  %s10 = ssub.s32 1, %s8
  %s11 = scalar_select 0, %s10, %s8
  $region1: #{tpu_custom_call.1} parent=0
    #allocation3 [shape = 'u8[1024]{0}', space=vmem, size = 0x400, scoped, tag = 'output window, operand 1']
    #allocation4 [shape = 's32[2]{0}', space=sflag, size = 0x8, scoped, tag = 'scoped memory for tpu_custom_call.1']
    #allocation5 [shape = 'u8[1024]{0}', space=vmem, size = 0x400, scoped, tag = 'output window, operand 2']
    #allocation6 [shape = 's32[2]{0}', space=sflag, size = 0x8, scoped, tag = 'scoped memory for tpu_custom_call.1']
    %12 = vsyncpa [#allocation4], 0
    %s13 = scalar_lea.sflag [#allocation4], 1
    %14 = vsyncpa %s13, 0
    %15 = vsyncpa [#allocation6], 0
    %s16 = scalar_lea.sflag [#allocation6], 1
    %17 = vsyncpa %s16, 0
    loop: start=0, step=1, limit=4
    $region2: #{tpu_custom_call.1} parent=1 // loop_pre_header
      _
    $region3: #{tpu_custom_call.1} parent=1 // loop_header
      %s19 = sphi 0, %s23
      %p20 = scmp.ge.s32.totalorder %s19, 4
      %s29 = sphi 0, %s31
      %s32 = sphi 0, %s29
      %s33 = sphi 0, %s32
      %s49 = sphi 0, %s33
      %s53 = sphi 0, %s53
      %s55 = sphi 0, %s53
      %s56 = sphi 0, %s55
      %s70 = sphi 0, %s56
      %s74 = sphi 0, %s74
      %s76 = sphi 0, %s74
      %s77 = sphi 0, %s76
      %s91 = sphi 0, %s77
      %s95 = sphi 0, %s95
      %s97 = sphi 0, %s95
      %s98 = sphi 0, %s97
      %s112 = sphi 0, %s98
      %s118 = sphi 0, %s120
      %s121 = sphi 0, %s118
      %s122 = sphi 0, %s121
      %s138 = sphi 0, %s122
      %s144 = sphi 0, %s146
      %s147 = sphi 0, %s144
      %s148 = sphi 0, %s147
      %s164 = sphi 0, %s148
      %s170 = sphi 0, %s172
      %s173 = sphi 0, %s170
      %s174 = sphi 0, %s173
      %s190 = sphi 0, %s174
    $region4: #{tpu_custom_call.1} parent=1 // loop_header_branch
      %22 = sbr.rel (%p20) target = $region8
    $region5: #{tpu_custom_call.1} parent=1 // loop_body
      %s24 = ssub.s32 %s19, 1
      %s25 = ssub.s32 %s19, 2
      %s26 = sadd.s32 %s19, 1
      %s27 = ssub.s32 %s19, %s26
      %p28 = scmp.eq.s32.totalorder %s27, 0
      %s30 = sadd.s32 %s29, 1
      %s31 = scalar_select %p28, %s29, %s30
      %p34 = pneg %p28
      %p35 = scmp.eq.s32.totalorder %s19, 1
      %p36 = por %p34, %p35
      %p37 = scmp.ne.s32.totalorder %s29, %s32
      %p38 = scmp.eq.s32.totalorder %s19, 0
      %p39 = por %p37, %p38
      %p40 = scmp.ne.s32.totalorder %s29, %s32
      %p41 = scmp.eq.s32.totalorder %s24, 1
      %p42 = por %p40, %p41
      %p43 = scmp.ne.s32.totalorder %s32, %s33
      %p44 = scmp.eq.s32.totalorder %s24, 0
      %p45 = por %p43, %p44
      %p46 = scmp.ne.s32.totalorder %s32, %s33
      %p47 = scmp.eq.s32.totalorder %s25, 1
      %p48 = por %p46, %p47
      %p50 = scmp.ne.s32.totalorder %s33, %s49
      %p51 = scmp.eq.s32.totalorder %s25, 0
      %p52 = por %p50, %p51
      %s54 = sadd.s32 %s53, 1
      %p57 = scmp.eq.s32.totalorder %s19, 1
      %p58 = scmp.ne.s32.totalorder %s53, %s55
      %p59 = scmp.eq.s32.totalorder %s19, 0
      %p60 = por %p58, %p59
      %p61 = scmp.ne.s32.totalorder %s53, %s55
      %p62 = scmp.eq.s32.totalorder %s24, 1
      %p63 = por %p61, %p62
      %p64 = scmp.ne.s32.totalorder %s55, %s56
      %p65 = scmp.eq.s32.totalorder %s24, 0
      %p66 = por %p64, %p65
      %p67 = scmp.ne.s32.totalorder %s55, %s56
      %p68 = scmp.eq.s32.totalorder %s25, 1
      %p69 = por %p67, %p68
      %p71 = scmp.ne.s32.totalorder %s56, %s70
      %p72 = scmp.eq.s32.totalorder %s25, 0
      %p73 = por %p71, %p72
      %s75 = sadd.s32 %s74, 1
      %p78 = scmp.eq.s32.totalorder %s19, 1
      %p79 = scmp.ne.s32.totalorder %s74, %s76
      %p80 = scmp.eq.s32.totalorder %s19, 0
      %p81 = por %p79, %p80
      %p82 = scmp.ne.s32.totalorder %s74, %s76
      %p83 = scmp.eq.s32.totalorder %s24, 1
      %p84 = por %p82, %p83
      %p85 = scmp.ne.s32.totalorder %s76, %s77
      %p86 = scmp.eq.s32.totalorder %s24, 0
      %p87 = por %p85, %p86
      %p88 = scmp.ne.s32.totalorder %s76, %s77
      %p89 = scmp.eq.s32.totalorder %s25, 1
      %p90 = por %p88, %p89
      %p92 = scmp.ne.s32.totalorder %s77, %s91
      %p93 = scmp.eq.s32.totalorder %s25, 0
      %p94 = por %p92, %p93
      %s96 = sadd.s32 %s95, 1
      %p99 = scmp.eq.s32.totalorder %s19, 1
      %p100 = scmp.ne.s32.totalorder %s95, %s97
      %p101 = scmp.eq.s32.totalorder %s19, 0
      %p102 = por %p100, %p101
      %p103 = scmp.ne.s32.totalorder %s95, %s97
      %p104 = scmp.eq.s32.totalorder %s24, 1
      %p105 = por %p103, %p104
      %p106 = scmp.ne.s32.totalorder %s97, %s98
      %p107 = scmp.eq.s32.totalorder %s24, 0
      %p108 = por %p106, %p107
      %p109 = scmp.ne.s32.totalorder %s97, %s98
      %p110 = scmp.eq.s32.totalorder %s25, 1
      %p111 = por %p109, %p110
      %p113 = scmp.ne.s32.totalorder %s98, %s112
      %p114 = scmp.eq.s32.totalorder %s25, 0
      %p115 = por %p113, %p114
      %s116 = ssub.s32 %s19, %s26
      %p117 = scmp.eq.s32.totalorder %s116, 0
      %s119 = sadd.s32 %s118, 1
      %s120 = scalar_select %p117, %s118, %s119
      %p123 = pneg %p117
      %p124 = scmp.eq.s32.totalorder %s19, 1
      %p125 = por %p123, %p124
      %p126 = scmp.ne.s32.totalorder %s118, %s121
      %p127 = scmp.eq.s32.totalorder %s19, 0
      %p128 = por %p126, %p127
      %p129 = scmp.ne.s32.totalorder %s118, %s121
      %p130 = scmp.eq.s32.totalorder %s24, 1
      %p131 = por %p129, %p130
      %p132 = scmp.ne.s32.totalorder %s121, %s122
      %p133 = scmp.eq.s32.totalorder %s24, 0
      %p134 = por %p132, %p133
      %p135 = scmp.ne.s32.totalorder %s121, %s122
      %p136 = scmp.eq.s32.totalorder %s25, 1
      %p137 = por %p135, %p136
      %p139 = scmp.ne.s32.totalorder %s122, %s138
      %p140 = scmp.eq.s32.totalorder %s25, 0
      %p141 = por %p139, %p140
      %s142 = ssub.s32 %s19, %s26
      %p143 = scmp.eq.s32.totalorder %s142, 0
      %s145 = sadd.s32 %s144, 1
      %s146 = scalar_select %p143, %s144, %s145
      %p149 = pneg %p143
      %p150 = scmp.eq.s32.totalorder %s19, 1
      %p151 = por %p149, %p150
      %p152 = scmp.ne.s32.totalorder %s144, %s147
      %p153 = scmp.eq.s32.totalorder %s19, 0
      %p154 = por %p152, %p153
      %p155 = scmp.ne.s32.totalorder %s144, %s147
      %p156 = scmp.eq.s32.totalorder %s24, 1
      %p157 = por %p155, %p156
      %p158 = scmp.ne.s32.totalorder %s147, %s148
      %p159 = scmp.eq.s32.totalorder %s24, 0
      %p160 = por %p158, %p159
      %p161 = scmp.ne.s32.totalorder %s147, %s148
      %p162 = scmp.eq.s32.totalorder %s25, 1
      %p163 = por %p161, %p162
      %p165 = scmp.ne.s32.totalorder %s148, %s164
      %p166 = scmp.eq.s32.totalorder %s25, 0
      %p167 = por %p165, %p166
      %s168 = ssub.s32 %s19, %s26
      %p169 = scmp.eq.s32.totalorder %s168, 0
      %s171 = sadd.s32 %s170, 1
      %s172 = scalar_select %p169, %s170, %s171
      %p175 = pneg %p169
      %p176 = scmp.eq.s32.totalorder %s19, 1
      %p177 = por %p175, %p176
      %p178 = scmp.ne.s32.totalorder %s170, %s173
      %p179 = scmp.eq.s32.totalorder %s19, 0
      %p180 = por %p178, %p179
      %p181 = scmp.ne.s32.totalorder %s170, %s173
      %p182 = scmp.eq.s32.totalorder %s24, 1
      %p183 = por %p181, %p182
      %p184 = scmp.ne.s32.totalorder %s173, %s174
      %p185 = scmp.eq.s32.totalorder %s24, 0
      %p186 = por %p184, %p185
      %p187 = scmp.ne.s32.totalorder %s173, %s174
      %p188 = scmp.eq.s32.totalorder %s25, 1
      %p189 = por %p187, %p188
      %p191 = scmp.ne.s32.totalorder %s174, %s190
      %p192 = scmp.eq.s32.totalorder %s25, 0
      %p193 = por %p191, %p192
      %p194 = scmp.le.s32.totalorder 1, %s19
      %p195 = scmp.lt.s32.totalorder %s19, 3
      %p196 = pnand %p194, %p195
      %p197 = pneg %p196
      // Predicated region
      $region9: #{tpu_custom_call.1} parent=5 // pred_check
        _
      $region10: #{tpu_custom_call.1} parent=5 // pred_check_branch
        %199 = sbr.rel (%p196) target = $region12
      $region11: #{tpu_custom_call.1} parent=5 // pred_region
        %s200 = ssub.s32 %s19, 1
        // Predicated region
        $region13: #{tpu_custom_call.1} parent=11 // pred_check
          %p201 = pneg %p66
        $region14: #{tpu_custom_call.1} parent=11 // pred_check_branch
          %203 = sbr.rel (%p201) target = $region16
        $region15: #{tpu_custom_call.1} parent=11 // pred_region
          _
        $region16: #{tpu_custom_call.1} parent=11 // pred_fallthru
          _
        // Predicated region
        $region17: #{tpu_custom_call.1} parent=11 // pred_check
          %p204 = pneg %p87
        $region18: #{tpu_custom_call.1} parent=11 // pred_check_branch
          %206 = sbr.rel (%p204) target = $region20
        $region19: #{tpu_custom_call.1} parent=11 // pred_region
          _
        $region20: #{tpu_custom_call.1} parent=11 // pred_fallthru
          _
        // Predicated region
        $region21: #{tpu_custom_call.1} parent=11 // pred_check
          %p207 = pneg %p108
        $region22: #{tpu_custom_call.1} parent=11 // pred_check_branch
          %209 = sbr.rel (%p207) target = $region24
        $region23: #{tpu_custom_call.1} parent=11 // pred_region
          _
        $region24: #{tpu_custom_call.1} parent=11 // pred_fallthru
          _
      $region12: #{tpu_custom_call.1} parent=5 // pred_fallthru
        _
      %p210 = scmp.lt.s32.totalorder %s19, 2
      // Predicated region
      $region25: #{tpu_custom_call.1} parent=5 // pred_check
        %p211 = pneg %p210
      $region26: #{tpu_custom_call.1} parent=5 // pred_check_branch
        %213 = sbr.rel (%p211) target = $region28
      $region27: #{tpu_custom_call.1} parent=5 // pred_region
        // Predicated region
        $region29: #{tpu_custom_call.1} parent=27 // pred_check
          %p214 = pneg %p39
        $region30: #{tpu_custom_call.1} parent=27 // pred_check_branch
          %216 = sbr.rel (%p214) target = $region32
        $region31: #{tpu_custom_call.1} parent=27 // pred_region
          %p217 = scmp.lt.s32.totalorder %s19, 1
          %s218 = scalar_select %p217, %s19, 1
          %s219 = smul.addr %s218, 8
          %s220 = smul.addr %s219, 4
          %s221 = scalar_lea.vmem %s0, %s220
        $region32: #{tpu_custom_call.1} parent=27 // pred_fallthru
          _
      $region28: #{tpu_custom_call.1} parent=5 // pred_fallthru
        _
      %p222 = scmp.le.s32.totalorder 1, %s19
      %p223 = scmp.lt.s32.totalorder %s19, 3
      %p224 = pnand %p222, %p223
      %p225 = pneg %p224
      // Predicated region
      $region33: #{tpu_custom_call.1} parent=5 // pred_check
        _
      $region34: #{tpu_custom_call.1} parent=5 // pred_check_branch
        %227 = sbr.rel (%p224) target = $region36
      $region35: #{tpu_custom_call.1} parent=5 // pred_region
        %s228 = ssub.s32 %s19, 1
        %p229 = scmp.lt.s32.totalorder %s24, 1
        %s230 = scalar_select %p229, %s24, 1
        %s231 = smul.addr %s230, 8
        %s232 = smul.addr %s231, 4
        %s233 = scalar_lea.vmem %s0, %s232
        %p234 = pneg %p45
        %p235 = pneg %p42
        %p236 = pneg %p66
        %p237 = pneg %p63
        %p238 = pneg %p87
        %p239 = pneg %p84
        %p240 = pneg %p108
        %p241 = pneg %p105
        %p242 = pneg %p134
        %p243 = pneg %p131
        %p244 = scmp.lt.s32.totalorder %s24, 1
        %s245 = scalar_select %p244, %s24, 1
        %s246 = smul.addr %s245, 8
        %s247 = smul.addr %s246, 8
        %s248 = scalar_lea.vmem %s4, %s247
        %p249 = pneg %p160
        %p250 = pneg %p157
        %s251 = sand.u32 %s147, 1
        %s252 = scalar_lea.sflag [#allocation4], %s251
        %s253 = sand.u32 %s147, 1
        %s254 = scalar_lea.vmem [#allocation3], %s253
        %p255 = pneg %p186
        %p256 = pneg %p183
        %s257 = sand.u32 %s173, 1
        %s258 = scalar_lea.sflag [#allocation6], %s257
        %s259 = sand.u32 %s173, 1
        %s260 = scalar_lea.vmem [#allocation5], %s259
        %p261 = scmp.lt.s32.totalorder %s24, 1
        %s262 = scalar_select %p261, %s24, 1
        %s263 = smul.addr %s262, 8
        %s264 = smul.addr %s263, 4
        %s265 = scalar_lea.vmem %s0, %s264
        %p266 = scmp.lt.s32.totalorder %s24, 1
        %s267 = scalar_select %p266, %s24, 1
        %s268 = smul.addr %s267, 8
        %s269 = smul.addr %s268, 8
        %s270 = scalar_lea.vmem %s4, %s269
        %v272 = vld [vmem:[%s265] sm:$0xf]
        %v273 = vld [vmem:[%s265 + $0x4] sm:$0xf]
        %v274 = vld [vmem:[%s265 + $0x8] sm:$0xf]
        %v275 = vld [vmem:[%s265 + $0xc] sm:$0xf]
        %v276 = vld [vmem:[%s265 + $0x10] sm:$0xf]
        %v277 = vld [vmem:[%s265 + $0x14] sm:$0xf]
        %v278 = vld [vmem:[%s265 + $0x18] sm:$0xf]
        %v279 = vld [vmem:[%s265 + $0x1c] sm:$0xf]
        %v280 = vld [vmem:[%s1] sm:$0xf]
        %v281 = vld [vmem:[%s1 + $0x4] sm:$0xf]
        %v282 = vld [vmem:[%s1 + $0x8] sm:$0xf]
        %v283 = vld [vmem:[%s1 + $0xc] sm:$0xf]
        %v284 = vld [vmem:[%s1 + $0x10] sm:$0xf]
        %v285 = vld [vmem:[%s1 + $0x14] sm:$0xf]
        %v286 = vld [vmem:[%s1 + $0x18] sm:$0xf]
        %v287 = vld [vmem:[%s1 + $0x1c] sm:$0xf]
        %v296 = vunpack.c.l.b16 %v272
        %v297 = vunpack.c.l.b16 %v273
        %v298 = vunpack.c.l.b16 %v274
        %v299 = vunpack.c.l.b16 %v275
        %v300 = vunpack.c.l.b16 %v276
        %v301 = vunpack.c.l.b16 %v277
        %v302 = vunpack.c.l.b16 %v278
        %v303 = vunpack.c.l.b16 %v279
        %v304 = vpack.c.b16 %v297, %v296
        %v305 = vpack.c.b16 %v299, %v298
        %v306 = vpack.c.b16 %v301, %v300
        %v307 = vpack.c.b16 %v303, %v302
        %v316 = vunpack.c.l.b16 %v280
        %v317 = vunpack.c.l.b16 %v281
        %v318 = vunpack.c.l.b16 %v282
        %v319 = vunpack.c.l.b16 %v283
        %v320 = vunpack.c.l.b16 %v284
        %v321 = vunpack.c.l.b16 %v285
        %v322 = vunpack.c.l.b16 %v286
        %v323 = vunpack.c.l.b16 %v287
        %v324 = vpack.c.b16 %v317, %v316
        %v325 = vpack.c.b16 %v319, %v318
        %v326 = vpack.c.b16 %v321, %v320
        %v327 = vpack.c.b16 %v323, %v322
        %vm332 = vcmask 523264
        %v334 = vsel %vm332, %v304, 0
        %v337 = vsel %vm332, %v305, 0
        %v340 = vsel %vm332, %v306, 0
        %v343 = vsel %vm332, %v307, 0
        %345 = vmatprep.subr.bf16.mxu0 0
        %346 = vmatpush1.bf16.msra.mxu0 %v324
        %347 = vmatprep.subr.bf16.mxu0 0
        %348 = vmatpush1.bf16.msra.mxu0 %v325
        %349 = vmatprep.subr.bf16.mxu0 0
        %350 = vmatpush1.bf16.msra.mxu0 %v326
        %351 = vmatprep.subr.bf16.mxu0 0
        %352 = vmatpush1.bf16.msra.mxu0 %v327
        %353 = vmatprep.subr.bf16.mxu0 0
        %354 = vmatpush1.bf16.msra.mxu0 0
        %355 = vmatprep.subr.bf16.mxu0 0
        %356 = vmatpush1.bf16.msra.mxu0 0
        %357 = vmatprep.subr.bf16.mxu0 0
        %358 = vmatpush1.bf16.msra.mxu0 0
        %359 = vmatprep.subr.bf16.mxu0 0
        %360 = vmatpush1.bf16.msra.mxu0 0
        %361 = vmatprep.subr.bf16.mxu0 0
        %362 = vmatpush1.bf16.msra.mxu0 0
        %363 = vmatprep.subr.bf16.mxu0 0
        %364 = vmatpush1.bf16.msra.mxu0 0
        %365 = vmatprep.subr.bf16.mxu0 0
        %366 = vmatpush1.bf16.msra.mxu0 0
        %367 = vmatprep.subr.bf16.mxu0 0
        %368 = vmatpush1.bf16.msra.mxu0 0
        %369 = vmatprep.subr.bf16.mxu0 0
        %370 = vmatpush1.bf16.msra.mxu0 0
        %371 = vmatprep.subr.bf16.mxu0 0
        %372 = vmatpush1.bf16.msra.mxu0 0
        %373 = vmatprep.subr.bf16.mxu0 0
        %374 = vmatpush1.bf16.msra.mxu0 0
        %375 = vmatprep.subr.bf16.mxu0 0
        %376 = vmatpush1.bf16.msra.mxu0 0
        %377 = vmatprep.mubr.bf16.mxu0 0
        %378 = vmatmul.mubr.bf16.gmra.mrb[0].mxu0 %v334
        %v379 = vpop.f32.mrb[0].mxu0
        %v380 = vadd.f32 0.0, %v379
        %v381 = vpop.f32.mrb[0].mxu0
        %v382 = vpop.f32.mrb[0].mxu0
        %v383 = vadd.f32 0.0, %v382
        %v384 = vpop.f32.mrb[0].mxu0
        %385 = vmatprep.mubr.bf16.mxu0 0
        %386 = vmatmul.mubr.bf16.gmra.mrb[0].mxu0 %v337
        %v387 = vpop.f32.mrb[0].mxu0
        %v388 = vadd.f32 0.0, %v387
        %v389 = vpop.f32.mrb[0].mxu0
        %v390 = vpop.f32.mrb[0].mxu0
        %v391 = vadd.f32 0.0, %v390
        %v392 = vpop.f32.mrb[0].mxu0
        %393 = vmatprep.mubr.bf16.mxu0 0
        %394 = vmatmul.mubr.bf16.gmra.mrb[0].mxu0 %v340
        %v395 = vpop.f32.mrb[0].mxu0
        %v396 = vadd.f32 0.0, %v395
        %v397 = vpop.f32.mrb[0].mxu0
        %v398 = vpop.f32.mrb[0].mxu0
        %v399 = vadd.f32 0.0, %v398
        %v400 = vpop.f32.mrb[0].mxu0
        %401 = vmatprep.mubr.bf16.mxu0 0
        %402 = vmatmul.mubr.bf16.gmra.mrb[0].mxu0 %v343
        %v403 = vpop.f32.mrb[0].mxu0
        %v404 = vadd.f32 0.0, %v403
        %v405 = vpop.f32.mrb[0].mxu0
        %v406 = vpop.f32.mrb[0].mxu0
        %v407 = vadd.f32 0.0, %v406
        %v408 = vpop.f32.mrb[0].mxu0
        %409 = vdwg.mxu0
        %v410 = vmax.f32 %v380, 0.0
        %v411 = vmax.f32 %v383, 0.0
        %v412 = vmax.f32 %v388, 0.0
        %v413 = vmax.f32 %v391, 0.0
        %v414 = vmax.f32 %v396, 0.0
        %v415 = vmax.f32 %v399, 0.0
        %v416 = vmax.f32 %v404, 0.0
        %v417 = vmax.f32 %v407, 0.0
        %vm418 = vcmask 60416
        %419 = vst.msk [vmem:[#allocation2] sm:$0xf] %vm418, 0
        %vm420 = vcmask 57344
        %421 = vst.msk [vmem:[#allocation2 + $0x4] sm:$0x1] %vm420, 0
        %s422 = scalar_lea.vmem [#allocation2], 72
        %423 = vst.msk [vmem:[%s422] sm:$0xf] %vm418, 0
        %424 = vst.msk [vmem:[%s422 + $0x4] sm:$0x1] %vm420, 0
        %vm425 = vcmask 57344
        %vm426 = vsmask.f32 256
        %vm427 = vmand %vm425, %vm426
        %v428 = vld [vmem:[#allocation2] sm:$0x1]
        %v429 = vsel %vm427, 0, %v428
        %430 = vst [vmem:[#allocation2] sm:$0x1] %v429
        %v431 = vld [vmem:[#allocation2 + $0x8] sm:$0x1]
        %v432 = vsel %vm427, 0, %v431
        %433 = vst [vmem:[#allocation2 + $0x8] sm:$0x1] %v432
        %v434 = vld [vmem:[#allocation2 + $0x10] sm:$0x1]
        %v435 = vsel %vm427, 0, %v434
        %436 = vst [vmem:[#allocation2 + $0x10] sm:$0x1] %v435
        %v437 = vld [vmem:[#allocation2 + $0x18] sm:$0x1]
        %v438 = vsel %vm427, 0, %v437
        %439 = vst [vmem:[#allocation2 + $0x18] sm:$0x1] %v438
        %v440 = vld [vmem:[#allocation2 + $0x20] sm:$0x1]
        %v441 = vsel %vm427, 0, %v440
        %442 = vst [vmem:[#allocation2 + $0x20] sm:$0x1] %v441
        %v443 = vld [vmem:[#allocation2 + $0x28] sm:$0x1]
        %v444 = vsel %vm427, 0, %v443
        %445 = vst [vmem:[#allocation2 + $0x28] sm:$0x1] %v444
        %v446 = vld [vmem:[#allocation2 + $0x30] sm:$0x1]
        %v447 = vsel %vm427, 0, %v446
        %448 = vst [vmem:[#allocation2 + $0x30] sm:$0x1] %v447
        %v449 = vld [vmem:[#allocation2 + $0x38] sm:$0x1]
        %v450 = vsel %vm427, 0, %v449
        %451 = vst [vmem:[#allocation2 + $0x38] sm:$0x1] %v450
        %v452 = vld [vmem:[#allocation2 + $0x40] sm:$0x1]
        %v453 = vsel %vm427, 0, %v452
        %454 = vst [vmem:[#allocation2 + $0x40] sm:$0x1] %v453
        %v455 = vld [vmem:[#allocation2 + $0x48] sm:$0x1]
        %v456 = vsel %vm427, 0, %v455
        %457 = vst [vmem:[#allocation2 + $0x48] sm:$0x1] %v456
        %vm458 = vsmask.f32 7938
        %vm459 = vmand %vm425, %vm458
        %v460 = vld [vmem:[#allocation2 + $0x4] sm:$0x1]
        %v461 = vsel %vm459, 0, %v460
        %462 = vst [vmem:[#allocation2 + $0x4] sm:$0x1] %v461
        %v463 = vld [vmem:[#allocation2 + $0xc] sm:$0x1]
        %v464 = vsel %vm459, 0, %v463
        %465 = vst [vmem:[#allocation2 + $0xc] sm:$0x1] %v464
        %v466 = vld [vmem:[#allocation2 + $0x14] sm:$0x1]
        %v467 = vsel %vm459, 0, %v466
        %468 = vst [vmem:[#allocation2 + $0x14] sm:$0x1] %v467
        %v469 = vld [vmem:[#allocation2 + $0x1c] sm:$0x1]
        %v470 = vsel %vm459, 0, %v469
        %471 = vst [vmem:[#allocation2 + $0x1c] sm:$0x1] %v470
        %v472 = vld [vmem:[#allocation2 + $0x24] sm:$0x1]
        %v473 = vsel %vm459, 0, %v472
        %474 = vst [vmem:[#allocation2 + $0x24] sm:$0x1] %v473
        %v475 = vld [vmem:[#allocation2 + $0x2c] sm:$0x1]
        %v476 = vsel %vm459, 0, %v475
        %477 = vst [vmem:[#allocation2 + $0x2c] sm:$0x1] %v476
        %v478 = vld [vmem:[#allocation2 + $0x34] sm:$0x1]
        %v479 = vsel %vm459, 0, %v478
        %480 = vst [vmem:[#allocation2 + $0x34] sm:$0x1] %v479
        %v481 = vld [vmem:[#allocation2 + $0x3c] sm:$0x1]
        %v482 = vsel %vm459, 0, %v481
        %483 = vst [vmem:[#allocation2 + $0x3c] sm:$0x1] %v482
        %v484 = vld [vmem:[#allocation2 + $0x44] sm:$0x1]
        %v485 = vsel %vm459, 0, %v484
        %486 = vst [vmem:[#allocation2 + $0x44] sm:$0x1] %v485
        %v487 = vld [vmem:[#allocation2 + $0x4c] sm:$0x1]
        %v488 = vsel %vm459, 0, %v487
        %489 = vst [vmem:[#allocation2 + $0x4c] sm:$0x1] %v488
        %v490 = vpack.c.bf16 %v411, %v410
        %v491 = vpack.c.bf16 %v413, %v412
        %v492 = vpack.c.bf16 %v415, %v414
        %v493 = vpack.c.bf16 %v417, %v416
        %v498 = vunpack.c.l.b16 %v490
        %v499 = vunpack.c.h.b16 %v490
        %v500 = vunpack.c.l.b16 %v491
        %v501 = vunpack.c.h.b16 %v491
        %v502 = vunpack.c.l.b16 %v492
        %v503 = vunpack.c.h.b16 %v492
        %v504 = vunpack.c.l.b16 %v493
        %v505 = vunpack.c.h.b16 %v493
        %v506 = vpack.c.b16 %v498, %v498
        %v507 = vpack.c.b16 %v499, %v499
        %v508 = vpack.c.b16 %v500, %v500
        %v509 = vpack.c.b16 %v501, %v501
        %v510 = vpack.c.b16 %v502, %v502
        %v511 = vpack.c.b16 %v503, %v503
        %v512 = vpack.c.b16 %v504, %v504
        %v513 = vpack.c.b16 %v505, %v505
        %v515 = vshrl.u32 %v506, 16
        %v517 = vrot.slane %v515, 7
        %v518 = vshll.u32 %v506, 16
        %v520 = vor.u32 %v517, %v518
        %v521 = vrot.slane %v517, 4
        %v523 = vshrl.u32 %v507, 16
        %v525 = vrot.slane %v523, 7
        %v526 = vshll.u32 %v507, 16
        %v528 = vor.u32 %v525, %v526
        %v529 = vrot.slane %v525, 4
        %v531 = vshrl.u32 %v508, 16
        %v533 = vrot.slane %v531, 7
        %v534 = vshll.u32 %v508, 16
        %v536 = vor.u32 %v533, %v534
        %v537 = vrot.slane %v533, 4
        %v539 = vshrl.u32 %v509, 16
        %v541 = vrot.slane %v539, 7
        %v542 = vshll.u32 %v509, 16
        %v544 = vor.u32 %v541, %v542
        %v545 = vrot.slane %v541, 4
        %v547 = vshrl.u32 %v510, 16
        %v549 = vrot.slane %v547, 7
        %v550 = vshll.u32 %v510, 16
        %v552 = vor.u32 %v549, %v550
        %v553 = vrot.slane %v549, 4
        %v555 = vshrl.u32 %v511, 16
        %v557 = vrot.slane %v555, 7
        %v558 = vshll.u32 %v511, 16
        %v560 = vor.u32 %v557, %v558
        %v561 = vrot.slane %v557, 4
        %v563 = vshrl.u32 %v512, 16
        %v565 = vrot.slane %v563, 7
        %v566 = vshll.u32 %v512, 16
        %v568 = vor.u32 %v565, %v566
        %v569 = vrot.slane %v565, 4
        %v571 = vshrl.u32 %v513, 16
        %v573 = vrot.slane %v571, 7
        %v574 = vshll.u32 %v513, 16
        %v576 = vor.u32 %v573, %v574
        %v577 = vrot.slane %v573, 4
        %s594 = scalar_lea.vmem [#allocation2], 8
        %vm595 = vcmask 60416
        %vm596 = vmand %vm595, %vm458
        %v597 = vld [vmem:[%s594] sm:$0xf]
        %v598 = vsel %vm596, %v520, %v597
        %599 = vst [vmem:[%s594] sm:$0xf] %v598
        %v600 = vld [vmem:[%s594 + $0x4] sm:$0x1]
        %v601 = vsel %vm427, %v521, %v600
        %602 = vst [vmem:[%s594 + $0x4] sm:$0x1] %v601
        %v603 = vld [vmem:[%s594 + $0x8] sm:$0xf]
        %v604 = vsel %vm596, %v528, %v603
        %605 = vst [vmem:[%s594 + $0x8] sm:$0xf] %v604
        %v606 = vld [vmem:[%s594 + $0xc] sm:$0x1]
        %v607 = vsel %vm427, %v529, %v606
        %608 = vst [vmem:[%s594 + $0xc] sm:$0x1] %v607
        %v609 = vld [vmem:[%s594 + $0x10] sm:$0xf]
        %v610 = vsel %vm596, %v536, %v609
        %611 = vst [vmem:[%s594 + $0x10] sm:$0xf] %v610
        %v612 = vld [vmem:[%s594 + $0x14] sm:$0x1]
        %v613 = vsel %vm427, %v537, %v612
        %614 = vst [vmem:[%s594 + $0x14] sm:$0x1] %v613
        %v615 = vld [vmem:[%s594 + $0x18] sm:$0xf]
        %v616 = vsel %vm596, %v544, %v615
        %617 = vst [vmem:[%s594 + $0x18] sm:$0xf] %v616
        %v618 = vld [vmem:[%s594 + $0x1c] sm:$0x1]
        %v619 = vsel %vm427, %v545, %v618
        %620 = vst [vmem:[%s594 + $0x1c] sm:$0x1] %v619
        %v621 = vld [vmem:[%s594 + $0x20] sm:$0xf]
        %v622 = vsel %vm596, %v552, %v621
        %623 = vst [vmem:[%s594 + $0x20] sm:$0xf] %v622
        %v624 = vld [vmem:[%s594 + $0x24] sm:$0x1]
        %v625 = vsel %vm427, %v553, %v624
        %626 = vst [vmem:[%s594 + $0x24] sm:$0x1] %v625
        %v627 = vld [vmem:[%s594 + $0x28] sm:$0xf]
        %v628 = vsel %vm596, %v560, %v627
        %629 = vst [vmem:[%s594 + $0x28] sm:$0xf] %v628
        %v630 = vld [vmem:[%s594 + $0x2c] sm:$0x1]
        %v631 = vsel %vm427, %v561, %v630
        %632 = vst [vmem:[%s594 + $0x2c] sm:$0x1] %v631
        %v633 = vld [vmem:[%s594 + $0x30] sm:$0xf]
        %v634 = vsel %vm596, %v568, %v633
        %635 = vst [vmem:[%s594 + $0x30] sm:$0xf] %v634
        %v636 = vld [vmem:[%s594 + $0x34] sm:$0x1]
        %v637 = vsel %vm427, %v569, %v636
        %638 = vst [vmem:[%s594 + $0x34] sm:$0x1] %v637
        %v639 = vld [vmem:[%s594 + $0x38] sm:$0xf]
        %v640 = vsel %vm596, %v576, %v639
        %641 = vst [vmem:[%s594 + $0x38] sm:$0xf] %v640
        %v642 = vld [vmem:[%s594 + $0x3c] sm:$0x1]
        %v643 = vsel %vm427, %v577, %v642
        %644 = vst [vmem:[%s594 + $0x3c] sm:$0x1] %v643
        %v645 = vld [vmem:[#allocation2] sm:$0xf]
        %v646 = vld [vmem:[#allocation2 + $0x8] sm:$0xf]
        %v647 = vld [vmem:[#allocation2 + $0x10] sm:$0xf]
        %v648 = vld [vmem:[#allocation2 + $0x18] sm:$0xf]
        %v649 = vld [vmem:[#allocation2 + $0x20] sm:$0xf]
        %v650 = vld [vmem:[#allocation2 + $0x28] sm:$0xf]
        %v651 = vld [vmem:[#allocation2 + $0x30] sm:$0xf]
        %v652 = vld [vmem:[#allocation2 + $0x38] sm:$0xf]
        %v653 = vld [vmem:[#allocation2 + $0x4] sm:$0x1]
        %v654 = vld [vmem:[#allocation2 + $0xc] sm:$0x1]
        %v655 = vld [vmem:[#allocation2 + $0x14] sm:$0x1]
        %v656 = vld [vmem:[#allocation2 + $0x1c] sm:$0x1]
        %v657 = vld [vmem:[#allocation2 + $0x24] sm:$0x1]
        %v658 = vld [vmem:[#allocation2 + $0x2c] sm:$0x1]
        %v659 = vld [vmem:[#allocation2 + $0x34] sm:$0x1]
        %v660 = vld [vmem:[#allocation2 + $0x3c] sm:$0x1]
        %vm661 = vsmask.f32 3328
        %vm662 = vsmask.f32 7440
        %vm663 = vmor %vm661, %vm662
        %v665 = vshrl.u32 %v645, 16
        %v667 = vrot.slane %v665, 4
        %v668 = vshll.u32 %v645, 16
        %v670 = vrot.slane %v668, 5
        %v671 = vor.u32 %v667, %v670
        %v672 = vrot.slane %v671, 4
        %v674 = vshll.u32 %v653, 16
        %v676 = vrot.slane %v674, 5
        %v677 = vsel %vm663, %v672, %v676
        %v679 = vshrl.u32 %v646, 16
        %v681 = vrot.slane %v679, 4
        %v682 = vshll.u32 %v646, 16
        %v684 = vrot.slane %v682, 5
        %v685 = vor.u32 %v681, %v684
        %v686 = vrot.slane %v685, 4
        %v688 = vshll.u32 %v654, 16
        %v690 = vrot.slane %v688, 5
        %v691 = vsel %vm663, %v686, %v690
        %v693 = vshrl.u32 %v647, 16
        %v695 = vrot.slane %v693, 4
        %v696 = vshll.u32 %v647, 16
        %v698 = vrot.slane %v696, 5
        %v699 = vor.u32 %v695, %v698
        %v700 = vrot.slane %v699, 4
        %v702 = vshll.u32 %v655, 16
        %v704 = vrot.slane %v702, 5
        %v705 = vsel %vm663, %v700, %v704
        %v707 = vshrl.u32 %v648, 16
        %v709 = vrot.slane %v707, 4
        %v710 = vshll.u32 %v648, 16
        %v712 = vrot.slane %v710, 5
        %v713 = vor.u32 %v709, %v712
        %v714 = vrot.slane %v713, 4
        %v716 = vshll.u32 %v656, 16
        %v718 = vrot.slane %v716, 5
        %v719 = vsel %vm663, %v714, %v718
        %v721 = vshrl.u32 %v649, 16
        %v723 = vrot.slane %v721, 4
        %v724 = vshll.u32 %v649, 16
        %v726 = vrot.slane %v724, 5
        %v727 = vor.u32 %v723, %v726
        %v728 = vrot.slane %v727, 4
        %v730 = vshll.u32 %v657, 16
        %v732 = vrot.slane %v730, 5
        %v733 = vsel %vm663, %v728, %v732
        %v735 = vshrl.u32 %v650, 16
        %v737 = vrot.slane %v735, 4
        %v738 = vshll.u32 %v650, 16
        %v740 = vrot.slane %v738, 5
        %v741 = vor.u32 %v737, %v740
        %v742 = vrot.slane %v741, 4
        %v744 = vshll.u32 %v658, 16
        %v746 = vrot.slane %v744, 5
        %v747 = vsel %vm663, %v742, %v746
        %v749 = vshrl.u32 %v651, 16
        %v751 = vrot.slane %v749, 4
        %v752 = vshll.u32 %v651, 16
        %v754 = vrot.slane %v752, 5
        %v755 = vor.u32 %v751, %v754
        %v756 = vrot.slane %v755, 4
        %v758 = vshll.u32 %v659, 16
        %v760 = vrot.slane %v758, 5
        %v761 = vsel %vm663, %v756, %v760
        %v763 = vshrl.u32 %v652, 16
        %v765 = vrot.slane %v763, 4
        %v766 = vshll.u32 %v652, 16
        %v768 = vrot.slane %v766, 5
        %v769 = vor.u32 %v765, %v768
        %v770 = vrot.slane %v769, 4
        %v772 = vshll.u32 %v660, 16
        %v774 = vrot.slane %v772, 5
        %v775 = vsel %vm663, %v770, %v774
        %v776 = vld [vmem:[#allocation2] sm:$0xe]
        %v777 = vld [vmem:[#allocation2 + $0x8] sm:$0xe]
        %v778 = vld [vmem:[#allocation2 + $0x10] sm:$0xe]
        %v779 = vld [vmem:[#allocation2 + $0x18] sm:$0xe]
        %v780 = vld [vmem:[#allocation2 + $0x20] sm:$0xe]
        %v781 = vld [vmem:[#allocation2 + $0x28] sm:$0xe]
        %v782 = vld [vmem:[#allocation2 + $0x30] sm:$0xe]
        %v783 = vld [vmem:[#allocation2 + $0x38] sm:$0xe]
        %vm800 = vcmask 1042432
        %vm801 = vcmask 1046532
        %vm802 = vmor %vm800, %vm801
        %v803 = vrot.slane %v776, 5
        %v804 = vrot.slane %v803, 4
        %v805 = vrot.slane %v653, 5
        %v806 = vsel %vm802, %v804, %v805
        %v807 = vrot.slane %v777, 5
        %v808 = vrot.slane %v807, 4
        %v809 = vrot.slane %v654, 5
        %v810 = vsel %vm802, %v808, %v809
        %v811 = vrot.slane %v778, 5
        %v812 = vrot.slane %v811, 4
        %v813 = vrot.slane %v655, 5
        %v814 = vsel %vm802, %v812, %v813
        %v815 = vrot.slane %v779, 5
        %v816 = vrot.slane %v815, 4
        %v817 = vrot.slane %v656, 5
        %v818 = vsel %vm802, %v816, %v817
        %v819 = vrot.slane %v780, 5
        %v820 = vrot.slane %v819, 4
        %v821 = vrot.slane %v657, 5
        %v822 = vsel %vm802, %v820, %v821
        %v823 = vrot.slane %v781, 5
        %v824 = vrot.slane %v823, 4
        %v825 = vrot.slane %v658, 5
        %v826 = vsel %vm802, %v824, %v825
        %v827 = vrot.slane %v782, 5
        %v828 = vrot.slane %v827, 4
        %v829 = vrot.slane %v659, 5
        %v830 = vsel %vm802, %v828, %v829
        %v831 = vrot.slane %v783, 5
        %v832 = vrot.slane %v831, 4
        %v833 = vrot.slane %v660, 5
        %v834 = vsel %vm802, %v832, %v833
        %v835 = vld [vmem:[%s594] sm:$0xf]
        %v836 = vld [vmem:[%s594 + $0x8] sm:$0xf]
        %v837 = vld [vmem:[%s594 + $0x10] sm:$0xf]
        %v838 = vld [vmem:[%s594 + $0x18] sm:$0xf]
        %v839 = vld [vmem:[%s594 + $0x20] sm:$0xf]
        %v840 = vld [vmem:[%s594 + $0x28] sm:$0xf]
        %v841 = vld [vmem:[%s594 + $0x30] sm:$0xf]
        %v842 = vld [vmem:[%s594 + $0x38] sm:$0xf]
        %v843 = vld [vmem:[%s594 + $0x4] sm:$0x1]
        %v844 = vld [vmem:[%s594 + $0xc] sm:$0x1]
        %v845 = vld [vmem:[%s594 + $0x14] sm:$0x1]
        %v846 = vld [vmem:[%s594 + $0x1c] sm:$0x1]
        %v847 = vld [vmem:[%s594 + $0x24] sm:$0x1]
        %v848 = vld [vmem:[%s594 + $0x2c] sm:$0x1]
        %v849 = vld [vmem:[%s594 + $0x34] sm:$0x1]
        %v850 = vld [vmem:[%s594 + $0x3c] sm:$0x1]
        %v852 = vshrl.u32 %v835, 16
        %v854 = vrot.slane %v852, 4
        %v855 = vshll.u32 %v835, 16
        %v857 = vrot.slane %v855, 5
        %v858 = vor.u32 %v854, %v857
        %v859 = vrot.slane %v858, 4
        %v861 = vshll.u32 %v843, 16
        %v863 = vrot.slane %v861, 5
        %v864 = vsel %vm663, %v859, %v863
        %v866 = vshrl.u32 %v836, 16
        %v868 = vrot.slane %v866, 4
        %v869 = vshll.u32 %v836, 16
        %v871 = vrot.slane %v869, 5
        %v872 = vor.u32 %v868, %v871
        %v873 = vrot.slane %v872, 4
        %v875 = vshll.u32 %v844, 16
        %v877 = vrot.slane %v875, 5
        %v878 = vsel %vm663, %v873, %v877
        %v880 = vshrl.u32 %v837, 16
        %v882 = vrot.slane %v880, 4
        %v883 = vshll.u32 %v837, 16
        %v885 = vrot.slane %v883, 5
        %v886 = vor.u32 %v882, %v885
        %v887 = vrot.slane %v886, 4
        %v889 = vshll.u32 %v845, 16
        %v891 = vrot.slane %v889, 5
        %v892 = vsel %vm663, %v887, %v891
        %v894 = vshrl.u32 %v838, 16
        %v896 = vrot.slane %v894, 4
        %v897 = vshll.u32 %v838, 16
        %v899 = vrot.slane %v897, 5
        %v900 = vor.u32 %v896, %v899
        %v901 = vrot.slane %v900, 4
        %v903 = vshll.u32 %v846, 16
        %v905 = vrot.slane %v903, 5
        %v906 = vsel %vm663, %v901, %v905
        %v908 = vshrl.u32 %v839, 16
        %v910 = vrot.slane %v908, 4
        %v911 = vshll.u32 %v839, 16
        %v913 = vrot.slane %v911, 5
        %v914 = vor.u32 %v910, %v913
        %v915 = vrot.slane %v914, 4
        %v917 = vshll.u32 %v847, 16
        %v919 = vrot.slane %v917, 5
        %v920 = vsel %vm663, %v915, %v919
        %v922 = vshrl.u32 %v840, 16
        %v924 = vrot.slane %v922, 4
        %v925 = vshll.u32 %v840, 16
        %v927 = vrot.slane %v925, 5
        %v928 = vor.u32 %v924, %v927
        %v929 = vrot.slane %v928, 4
        %v931 = vshll.u32 %v848, 16
        %v933 = vrot.slane %v931, 5
        %v934 = vsel %vm663, %v929, %v933
        %v936 = vshrl.u32 %v841, 16
        %v938 = vrot.slane %v936, 4
        %v939 = vshll.u32 %v841, 16
        %v941 = vrot.slane %v939, 5
        %v942 = vor.u32 %v938, %v941
        %v943 = vrot.slane %v942, 4
        %v945 = vshll.u32 %v849, 16
        %v947 = vrot.slane %v945, 5
        %v948 = vsel %vm663, %v943, %v947
        %v950 = vshrl.u32 %v842, 16
        %v952 = vrot.slane %v950, 4
        %v953 = vshll.u32 %v842, 16
        %v955 = vrot.slane %v953, 5
        %v956 = vor.u32 %v952, %v955
        %v957 = vrot.slane %v956, 4
        %v959 = vshll.u32 %v850, 16
        %v961 = vrot.slane %v959, 5
        %v962 = vsel %vm663, %v957, %v961
        %v963 = vld [vmem:[%s594] sm:$0xe]
        %v964 = vld [vmem:[%s594 + $0x8] sm:$0xe]
        %v965 = vld [vmem:[%s594 + $0x10] sm:$0xe]
        %v966 = vld [vmem:[%s594 + $0x18] sm:$0xe]
        %v967 = vld [vmem:[%s594 + $0x20] sm:$0xe]
        %v968 = vld [vmem:[%s594 + $0x28] sm:$0xe]
        %v969 = vld [vmem:[%s594 + $0x30] sm:$0xe]
        %v970 = vld [vmem:[%s594 + $0x38] sm:$0xe]
        %v987 = vrot.slane %v963, 5
        %v988 = vrot.slane %v987, 4
        %v989 = vrot.slane %v843, 5
        %v990 = vsel %vm802, %v988, %v989
        %v991 = vrot.slane %v964, 5
        %v992 = vrot.slane %v991, 4
        %v993 = vrot.slane %v844, 5
        %v994 = vsel %vm802, %v992, %v993
        %v995 = vrot.slane %v965, 5
        %v996 = vrot.slane %v995, 4
        %v997 = vrot.slane %v845, 5
        %v998 = vsel %vm802, %v996, %v997
        %v999 = vrot.slane %v966, 5
        %v1000 = vrot.slane %v999, 4
        %v1001 = vrot.slane %v846, 5
        %v1002 = vsel %vm802, %v1000, %v1001
        %v1003 = vrot.slane %v967, 5
        %v1004 = vrot.slane %v1003, 4
        %v1005 = vrot.slane %v847, 5
        %v1006 = vsel %vm802, %v1004, %v1005
        %v1007 = vrot.slane %v968, 5
        %v1008 = vrot.slane %v1007, 4
        %v1009 = vrot.slane %v848, 5
        %v1010 = vsel %vm802, %v1008, %v1009
        %v1011 = vrot.slane %v969, 5
        %v1012 = vrot.slane %v1011, 4
        %v1013 = vrot.slane %v849, 5
        %v1014 = vsel %vm802, %v1012, %v1013
        %v1015 = vrot.slane %v970, 5
        %v1016 = vrot.slane %v1015, 4
        %v1017 = vrot.slane %v850, 5
        %v1018 = vsel %vm802, %v1016, %v1017
        %s1019 = scalar_lea.vmem [#allocation2], 16
        %v1020 = vld [vmem:[%s1019] sm:$0xf]
        %v1021 = vld [vmem:[%s1019 + $0x8] sm:$0xf]
        %v1022 = vld [vmem:[%s1019 + $0x10] sm:$0xf]
        %v1023 = vld [vmem:[%s1019 + $0x18] sm:$0xf]
        %v1024 = vld [vmem:[%s1019 + $0x20] sm:$0xf]
        %v1025 = vld [vmem:[%s1019 + $0x28] sm:$0xf]
        %v1026 = vld [vmem:[%s1019 + $0x30] sm:$0xf]
        %v1027 = vld [vmem:[%s1019 + $0x38] sm:$0xf]
        %v1028 = vld [vmem:[%s1019 + $0x4] sm:$0x1]
        %v1029 = vld [vmem:[%s1019 + $0xc] sm:$0x1]
        %v1030 = vld [vmem:[%s1019 + $0x14] sm:$0x1]
        %v1031 = vld [vmem:[%s1019 + $0x1c] sm:$0x1]
        %v1032 = vld [vmem:[%s1019 + $0x24] sm:$0x1]
        %v1033 = vld [vmem:[%s1019 + $0x2c] sm:$0x1]
        %v1034 = vld [vmem:[%s1019 + $0x34] sm:$0x1]
        %v1035 = vld [vmem:[%s1019 + $0x3c] sm:$0x1]
        %v1037 = vshrl.u32 %v1020, 16
        %v1039 = vrot.slane %v1037, 4
        %v1040 = vshll.u32 %v1020, 16
        %v1042 = vrot.slane %v1040, 5
        %v1043 = vor.u32 %v1039, %v1042
        %v1044 = vrot.slane %v1043, 4
        %v1046 = vshll.u32 %v1028, 16
        %v1048 = vrot.slane %v1046, 5
        %v1049 = vsel %vm663, %v1044, %v1048
        %v1051 = vshrl.u32 %v1021, 16
        %v1053 = vrot.slane %v1051, 4
        %v1054 = vshll.u32 %v1021, 16
        %v1056 = vrot.slane %v1054, 5
        %v1057 = vor.u32 %v1053, %v1056
        %v1058 = vrot.slane %v1057, 4
        %v1060 = vshll.u32 %v1029, 16
        %v1062 = vrot.slane %v1060, 5
        %v1063 = vsel %vm663, %v1058, %v1062
        %v1065 = vshrl.u32 %v1022, 16
        %v1067 = vrot.slane %v1065, 4
        %v1068 = vshll.u32 %v1022, 16
        %v1070 = vrot.slane %v1068, 5
        %v1071 = vor.u32 %v1067, %v1070
        %v1072 = vrot.slane %v1071, 4
        %v1074 = vshll.u32 %v1030, 16
        %v1076 = vrot.slane %v1074, 5
        %v1077 = vsel %vm663, %v1072, %v1076
        %v1079 = vshrl.u32 %v1023, 16
        %v1081 = vrot.slane %v1079, 4
        %v1082 = vshll.u32 %v1023, 16
        %v1084 = vrot.slane %v1082, 5
        %v1085 = vor.u32 %v1081, %v1084
        %v1086 = vrot.slane %v1085, 4
        %v1088 = vshll.u32 %v1031, 16
        %v1090 = vrot.slane %v1088, 5
        %v1091 = vsel %vm663, %v1086, %v1090
        %v1093 = vshrl.u32 %v1024, 16
        %v1095 = vrot.slane %v1093, 4
        %v1096 = vshll.u32 %v1024, 16
        %v1098 = vrot.slane %v1096, 5
        %v1099 = vor.u32 %v1095, %v1098
        %v1100 = vrot.slane %v1099, 4
        %v1102 = vshll.u32 %v1032, 16
        %v1104 = vrot.slane %v1102, 5
        %v1105 = vsel %vm663, %v1100, %v1104
        %v1107 = vshrl.u32 %v1025, 16
        %v1109 = vrot.slane %v1107, 4
        %v1110 = vshll.u32 %v1025, 16
        %v1112 = vrot.slane %v1110, 5
        %v1113 = vor.u32 %v1109, %v1112
        %v1114 = vrot.slane %v1113, 4
        %v1116 = vshll.u32 %v1033, 16
        %v1118 = vrot.slane %v1116, 5
        %v1119 = vsel %vm663, %v1114, %v1118
        %v1121 = vshrl.u32 %v1026, 16
        %v1123 = vrot.slane %v1121, 4
        %v1124 = vshll.u32 %v1026, 16
        %v1126 = vrot.slane %v1124, 5
        %v1127 = vor.u32 %v1123, %v1126
        %v1128 = vrot.slane %v1127, 4
        %v1130 = vshll.u32 %v1034, 16
        %v1132 = vrot.slane %v1130, 5
        %v1133 = vsel %vm663, %v1128, %v1132
        %v1135 = vshrl.u32 %v1027, 16
        %v1137 = vrot.slane %v1135, 4
        %v1138 = vshll.u32 %v1027, 16
        %v1140 = vrot.slane %v1138, 5
        %v1141 = vor.u32 %v1137, %v1140
        %v1142 = vrot.slane %v1141, 4
        %v1144 = vshll.u32 %v1035, 16
        %v1146 = vrot.slane %v1144, 5
        %v1147 = vsel %vm663, %v1142, %v1146
        %v1148 = vld [vmem:[%s1019] sm:$0xe]
        %v1149 = vld [vmem:[%s1019 + $0x8] sm:$0xe]
        %v1150 = vld [vmem:[%s1019 + $0x10] sm:$0xe]
        %v1151 = vld [vmem:[%s1019 + $0x18] sm:$0xe]
        %v1152 = vld [vmem:[%s1019 + $0x20] sm:$0xe]
        %v1153 = vld [vmem:[%s1019 + $0x28] sm:$0xe]
        %v1154 = vld [vmem:[%s1019 + $0x30] sm:$0xe]
        %v1155 = vld [vmem:[%s1019 + $0x38] sm:$0xe]
        %v1172 = vrot.slane %v1148, 5
        %v1173 = vrot.slane %v1172, 4
        %v1174 = vrot.slane %v1028, 5
        %v1175 = vsel %vm802, %v1173, %v1174
        %v1176 = vrot.slane %v1149, 5
        %v1177 = vrot.slane %v1176, 4
        %v1178 = vrot.slane %v1029, 5
        %v1179 = vsel %vm802, %v1177, %v1178
        %v1180 = vrot.slane %v1150, 5
        %v1181 = vrot.slane %v1180, 4
        %v1182 = vrot.slane %v1030, 5
        %v1183 = vsel %vm802, %v1181, %v1182
        %v1184 = vrot.slane %v1151, 5
        %v1185 = vrot.slane %v1184, 4
        %v1186 = vrot.slane %v1031, 5
        %v1187 = vsel %vm802, %v1185, %v1186
        %v1188 = vrot.slane %v1152, 5
        %v1189 = vrot.slane %v1188, 4
        %v1190 = vrot.slane %v1032, 5
        %v1191 = vsel %vm802, %v1189, %v1190
        %v1192 = vrot.slane %v1153, 5
        %v1193 = vrot.slane %v1192, 4
        %v1194 = vrot.slane %v1033, 5
        %v1195 = vsel %vm802, %v1193, %v1194
        %v1196 = vrot.slane %v1154, 5
        %v1197 = vrot.slane %v1196, 4
        %v1198 = vrot.slane %v1034, 5
        %v1199 = vsel %vm802, %v1197, %v1198
        %v1200 = vrot.slane %v1155, 5
        %v1201 = vrot.slane %v1200, 4
        %v1202 = vrot.slane %v1035, 5
        %v1203 = vsel %vm802, %v1201, %v1202
        %v1212 = vunpack.c.l.b16 %v645
        %v1213 = vunpack.c.l.b16 %v646
        %v1214 = vunpack.c.l.b16 %v647
        %v1215 = vunpack.c.l.b16 %v648
        %v1216 = vunpack.c.l.b16 %v649
        %v1217 = vunpack.c.l.b16 %v650
        %v1218 = vunpack.c.l.b16 %v651
        %v1219 = vunpack.c.l.b16 %v652
        %v1220 = vpack.c.b16 %v1213, %v1212
        %v1221 = vpack.c.b16 %v1215, %v1214
        %v1222 = vpack.c.b16 %v1217, %v1216
        %v1223 = vpack.c.b16 %v1219, %v1218
        %v1224 = vunpack.c.l.b16 %v677
        %v1225 = vunpack.c.l.b16 %v691
        %v1226 = vunpack.c.l.b16 %v705
        %v1227 = vunpack.c.l.b16 %v719
        %v1228 = vunpack.c.l.b16 %v733
        %v1229 = vunpack.c.l.b16 %v747
        %v1230 = vunpack.c.l.b16 %v761
        %v1231 = vunpack.c.l.b16 %v775
        %v1232 = vpack.c.b16 %v1225, %v1224
        %v1233 = vpack.c.b16 %v1227, %v1226
        %v1234 = vpack.c.b16 %v1229, %v1228
        %v1235 = vpack.c.b16 %v1231, %v1230
        %1236 = vrot.lane.b32.xlu0 %v1232, 8
        %v1237 = vpop.permute.xlu0 %1236
        %1238 = vrot.lane.b32.xlu0 %v1233, 8
        %v1239 = vpop.permute.xlu0 %1238
        %1240 = vrot.lane.b32.xlu0 %v1234, 8
        %v1241 = vpop.permute.xlu0 %1240
        %1242 = vrot.lane.b32.xlu0 %v1235, 8
        %v1243 = vpop.permute.xlu0 %1242
        %v1244 = vunpack.c.l.b16 %v806
        %v1245 = vunpack.c.l.b16 %v810
        %v1246 = vunpack.c.l.b16 %v814
        %v1247 = vunpack.c.l.b16 %v818
        %v1248 = vunpack.c.l.b16 %v822
        %v1249 = vunpack.c.l.b16 %v826
        %v1250 = vunpack.c.l.b16 %v830
        %v1251 = vunpack.c.l.b16 %v834
        %v1252 = vpack.c.b16 %v1245, %v1244
        %v1253 = vpack.c.b16 %v1247, %v1246
        %v1254 = vpack.c.b16 %v1249, %v1248
        %v1255 = vpack.c.b16 %v1251, %v1250
        %1256 = vrot.lane.b32.xlu0 %v1252, 16
        %v1257 = vpop.permute.xlu0 %1256
        %1258 = vrot.lane.b32.xlu0 %v1253, 16
        %v1259 = vpop.permute.xlu0 %1258
        %1260 = vrot.lane.b32.xlu0 %v1254, 16
        %v1261 = vpop.permute.xlu0 %1260
        %1262 = vrot.lane.b32.xlu0 %v1255, 16
        %v1263 = vpop.permute.xlu0 %1262
        %v1272 = vunpack.c.l.b16 %v835
        %v1273 = vunpack.c.l.b16 %v836
        %v1274 = vunpack.c.l.b16 %v837
        %v1275 = vunpack.c.l.b16 %v838
        %v1276 = vunpack.c.l.b16 %v839
        %v1277 = vunpack.c.l.b16 %v840
        %v1278 = vunpack.c.l.b16 %v841
        %v1279 = vunpack.c.l.b16 %v842
        %v1280 = vpack.c.b16 %v1273, %v1272
        %v1281 = vpack.c.b16 %v1275, %v1274
        %v1282 = vpack.c.b16 %v1277, %v1276
        %v1283 = vpack.c.b16 %v1279, %v1278
        %1284 = vrot.lane.b32.xlu0 %v1280, 24
        %v1285 = vpop.permute.xlu0 %1284
        %1286 = vrot.lane.b32.xlu0 %v1281, 24
        %v1287 = vpop.permute.xlu0 %1286
        %1288 = vrot.lane.b32.xlu0 %v1282, 24
        %v1289 = vpop.permute.xlu0 %1288
        %1290 = vrot.lane.b32.xlu0 %v1283, 24
        %v1291 = vpop.permute.xlu0 %1290
        %v1292 = vunpack.c.l.b16 %v864
        %v1293 = vunpack.c.l.b16 %v878
        %v1294 = vunpack.c.l.b16 %v892
        %v1295 = vunpack.c.l.b16 %v906
        %v1296 = vunpack.c.l.b16 %v920
        %v1297 = vunpack.c.l.b16 %v934
        %v1298 = vunpack.c.l.b16 %v948
        %v1299 = vunpack.c.l.b16 %v962
        %v1300 = vpack.c.b16 %v1293, %v1292
        %v1301 = vpack.c.b16 %v1295, %v1294
        %v1302 = vpack.c.b16 %v1297, %v1296
        %v1303 = vpack.c.b16 %v1299, %v1298
        %1304 = vrot.lane.b32.xlu0 %v1300, 32
        %v1305 = vpop.permute.xlu0 %1304
        %1306 = vrot.lane.b32.xlu0 %v1301, 32
        %v1307 = vpop.permute.xlu0 %1306
        %1308 = vrot.lane.b32.xlu0 %v1302, 32
        %v1309 = vpop.permute.xlu0 %1308
        %1310 = vrot.lane.b32.xlu0 %v1303, 32
        %v1311 = vpop.permute.xlu0 %1310
        %v1312 = vunpack.c.l.b16 %v990
        %v1313 = vunpack.c.l.b16 %v994
        %v1314 = vunpack.c.l.b16 %v998
        %v1315 = vunpack.c.l.b16 %v1002
        %v1316 = vunpack.c.l.b16 %v1006
        %v1317 = vunpack.c.l.b16 %v1010
        %v1318 = vunpack.c.l.b16 %v1014
        %v1319 = vunpack.c.l.b16 %v1018
        %v1320 = vpack.c.b16 %v1313, %v1312
        %v1321 = vpack.c.b16 %v1315, %v1314
        %v1322 = vpack.c.b16 %v1317, %v1316
        %v1323 = vpack.c.b16 %v1319, %v1318
        %1324 = vrot.lane.b32.xlu0 %v1320, 40
        %v1325 = vpop.permute.xlu0 %1324
        %1326 = vrot.lane.b32.xlu0 %v1321, 40
        %v1327 = vpop.permute.xlu0 %1326
        %1328 = vrot.lane.b32.xlu0 %v1322, 40
        %v1329 = vpop.permute.xlu0 %1328
        %1330 = vrot.lane.b32.xlu0 %v1323, 40
        %v1331 = vpop.permute.xlu0 %1330
        %v1340 = vunpack.c.l.b16 %v1020
        %v1341 = vunpack.c.l.b16 %v1021
        %v1342 = vunpack.c.l.b16 %v1022
        %v1343 = vunpack.c.l.b16 %v1023
        %v1344 = vunpack.c.l.b16 %v1024
        %v1345 = vunpack.c.l.b16 %v1025
        %v1346 = vunpack.c.l.b16 %v1026
        %v1347 = vunpack.c.l.b16 %v1027
        %v1348 = vpack.c.b16 %v1341, %v1340
        %v1349 = vpack.c.b16 %v1343, %v1342
        %v1350 = vpack.c.b16 %v1345, %v1344
        %v1351 = vpack.c.b16 %v1347, %v1346
        %1352 = vrot.lane.b32.xlu0 %v1348, 48
        %v1353 = vpop.permute.xlu0 %1352
        %1354 = vrot.lane.b32.xlu0 %v1349, 48
        %v1355 = vpop.permute.xlu0 %1354
        %1356 = vrot.lane.b32.xlu0 %v1350, 48
        %v1357 = vpop.permute.xlu0 %1356
        %1358 = vrot.lane.b32.xlu0 %v1351, 48
        %v1359 = vpop.permute.xlu0 %1358
        %v1360 = vunpack.c.l.b16 %v1049
        %v1361 = vunpack.c.l.b16 %v1063
        %v1362 = vunpack.c.l.b16 %v1077
        %v1363 = vunpack.c.l.b16 %v1091
        %v1364 = vunpack.c.l.b16 %v1105
        %v1365 = vunpack.c.l.b16 %v1119
        %v1366 = vunpack.c.l.b16 %v1133
        %v1367 = vunpack.c.l.b16 %v1147
        %v1368 = vpack.c.b16 %v1361, %v1360
        %v1369 = vpack.c.b16 %v1363, %v1362
        %v1370 = vpack.c.b16 %v1365, %v1364
        %v1371 = vpack.c.b16 %v1367, %v1366
        %1372 = vrot.lane.b32.xlu0 %v1368, 56
        %v1373 = vpop.permute.xlu0 %1372
        %1374 = vrot.lane.b32.xlu0 %v1369, 56
        %v1375 = vpop.permute.xlu0 %1374
        %1376 = vrot.lane.b32.xlu0 %v1370, 56
        %v1377 = vpop.permute.xlu0 %1376
        %1378 = vrot.lane.b32.xlu0 %v1371, 56
        %v1379 = vpop.permute.xlu0 %1378
        %v1380 = vunpack.c.l.b16 %v1175
        %v1381 = vunpack.c.l.b16 %v1179
        %v1382 = vunpack.c.l.b16 %v1183
        %v1383 = vunpack.c.l.b16 %v1187
        %v1384 = vunpack.c.l.b16 %v1191
        %v1385 = vunpack.c.l.b16 %v1195
        %v1386 = vunpack.c.l.b16 %v1199
        %v1387 = vunpack.c.l.b16 %v1203
        %v1388 = vpack.c.b16 %v1381, %v1380
        %v1389 = vpack.c.b16 %v1383, %v1382
        %v1390 = vpack.c.b16 %v1385, %v1384
        %v1391 = vpack.c.b16 %v1387, %v1386
        %1392 = vrot.lane.b32.xlu0 %v1388, 64
        %v1393 = vpop.permute.xlu0 %1392
        %1394 = vrot.lane.b32.xlu0 %v1389, 64
        %v1395 = vpop.permute.xlu0 %1394
        %1396 = vrot.lane.b32.xlu0 %v1390, 64
        %v1397 = vpop.permute.xlu0 %1396
        %1398 = vrot.lane.b32.xlu0 %v1391, 64
        %v1399 = vpop.permute.xlu0 %1398
        %vm1400 = vcmask 64512
        %v1403 = vsel %vm1400, %v1220, %v1237
        %v1406 = vsel %vm1400, %v1221, %v1239
        %v1409 = vsel %vm1400, %v1222, %v1241
        %v1412 = vsel %vm1400, %v1223, %v1243
        %vm1413 = vcmask 130048
        %v1415 = vsel %vm1413, %v1403, %v1257
        %v1417 = vsel %vm1413, %v1406, %v1259
        %v1419 = vsel %vm1413, %v1409, %v1261
        %v1421 = vsel %vm1413, %v1412, %v1263
        %vm1422 = vcmask 195584
        %v1424 = vsel %vm1422, %v1415, %v1285
        %v1426 = vsel %vm1422, %v1417, %v1287
        %v1428 = vsel %vm1422, %v1419, %v1289
        %v1430 = vsel %vm1422, %v1421, %v1291
        %vm1431 = vcmask 261120
        %v1433 = vsel %vm1431, %v1424, %v1305
        %v1435 = vsel %vm1431, %v1426, %v1307
        %v1437 = vsel %vm1431, %v1428, %v1309
        %v1439 = vsel %vm1431, %v1430, %v1311
        %vm1440 = vcmask 326656
        %v1442 = vsel %vm1440, %v1433, %v1325
        %v1444 = vsel %vm1440, %v1435, %v1327
        %v1446 = vsel %vm1440, %v1437, %v1329
        %v1448 = vsel %vm1440, %v1439, %v1331
        %vm1449 = vcmask 392192
        %v1451 = vsel %vm1449, %v1442, %v1353
        %v1453 = vsel %vm1449, %v1444, %v1355
        %v1455 = vsel %vm1449, %v1446, %v1357
        %v1457 = vsel %vm1449, %v1448, %v1359
        %vm1458 = vcmask 457728
        %v1460 = vsel %vm1458, %v1451, %v1373
        %v1462 = vsel %vm1458, %v1453, %v1375
        %v1464 = vsel %vm1458, %v1455, %v1377
        %v1466 = vsel %vm1458, %v1457, %v1379
        %v1468 = vsel %vm332, %v1460, %v1393
        %v1470 = vsel %vm332, %v1462, %v1395
        %v1472 = vsel %vm332, %v1464, %v1397
        %v1474 = vsel %vm332, %v1466, %v1399
        %v1475 = vld [vmem:[%s2] sm:$0xf]
        %v1476 = vld [vmem:[%s2 + $0x4] sm:$0xf]
        %v1477 = vld [vmem:[%s2 + $0x8] sm:$0xf]
        %v1478 = vld [vmem:[%s2 + $0xc] sm:$0xf]
        %v1479 = vld [vmem:[%s2 + $0x10] sm:$0xf]
        %v1480 = vld [vmem:[%s2 + $0x14] sm:$0xf]
        %v1487 = vunpack.c.l.b16 %v1475
        %v1488 = vunpack.c.l.b16 %v1476
        %v1489 = vunpack.c.l.b16 %v1477
        %v1490 = vunpack.c.l.b16 %v1478
        %v1491 = vunpack.c.l.b16 %v1479
        %v1492 = vunpack.c.l.b16 %v1480
        %v1493 = vpack.c.b16 %v1488, %v1487
        %v1494 = vpack.c.b16 %v1490, %v1489
        %v1495 = vpack.c.b16 %v1492, %v1491
        %v1499 = vsel %vm1449, %v1468, 0
        %v1501 = vsel %vm1449, %v1470, 0
        %v1503 = vsel %vm1449, %v1472, 0
        %v1505 = vsel %vm1449, %v1474, 0
        %1507 = vmatprep.subr.bf16.mxu0 0
        %1508 = vmatpush1.bf16.msra.mxu0 %v1493
        %1509 = vmatprep.subr.bf16.mxu0 0
        %1510 = vmatpush1.bf16.msra.mxu0 %v1494
        %1511 = vmatprep.subr.bf16.mxu0 0
        %1512 = vmatpush1.bf16.msra.mxu0 %v1495
        %1513 = vmatprep.subr.bf16.mxu0 0
        %1514 = vmatpush1.bf16.msra.mxu0 0
        %1515 = vmatprep.subr.bf16.mxu0 0
        %1516 = vmatpush1.bf16.msra.mxu0 0
        %1517 = vmatprep.subr.bf16.mxu0 0
        %1518 = vmatpush1.bf16.msra.mxu0 0
        %1519 = vmatprep.subr.bf16.mxu0 0
        %1520 = vmatpush1.bf16.msra.mxu0 0
        %1521 = vmatprep.subr.bf16.mxu0 0
        %1522 = vmatpush1.bf16.msra.mxu0 0
        %1523 = vmatprep.subr.bf16.mxu0 0
        %1524 = vmatpush1.bf16.msra.mxu0 0
        %1525 = vmatprep.subr.bf16.mxu0 0
        %1526 = vmatpush1.bf16.msra.mxu0 0
        %1527 = vmatprep.subr.bf16.mxu0 0
        %1528 = vmatpush1.bf16.msra.mxu0 0
        %1529 = vmatprep.subr.bf16.mxu0 0
        %1530 = vmatpush1.bf16.msra.mxu0 0
        %1531 = vmatprep.subr.bf16.mxu0 0
        %1532 = vmatpush1.bf16.msra.mxu0 0
        %1533 = vmatprep.subr.bf16.mxu0 0
        %1534 = vmatpush1.bf16.msra.mxu0 0
        %1535 = vmatprep.subr.bf16.mxu0 0
        %1536 = vmatpush1.bf16.msra.mxu0 0
        %1537 = vmatprep.subr.bf16.mxu0 0
        %1538 = vmatpush1.bf16.msra.mxu0 0
        %1539 = vmatprep.mubr.bf16.mxu0 0
        %1540 = vmatmul.mubr.bf16.gmra.mrb[0].mxu0 %v1499
        %v1541 = vpop.f32.mrb[0].mxu0
        %v1542 = vadd.f32 0.0, %v1541
        %v1543 = vpop.f32.mrb[0].mxu0
        %v1544 = vpop.f32.mrb[0].mxu0
        %v1545 = vadd.f32 0.0, %v1544
        %v1546 = vpop.f32.mrb[0].mxu0
        %1547 = vmatprep.mubr.bf16.mxu0 0
        %1548 = vmatmul.mubr.bf16.gmra.mrb[0].mxu0 %v1501
        %v1549 = vpop.f32.mrb[0].mxu0
        %v1550 = vadd.f32 0.0, %v1549
        %v1551 = vpop.f32.mrb[0].mxu0
        %v1552 = vpop.f32.mrb[0].mxu0
        %v1553 = vadd.f32 0.0, %v1552
        %v1554 = vpop.f32.mrb[0].mxu0
        %1555 = vmatprep.mubr.bf16.mxu0 0
        %1556 = vmatmul.mubr.bf16.gmra.mrb[0].mxu0 %v1503
        %v1557 = vpop.f32.mrb[0].mxu0
        %v1558 = vadd.f32 0.0, %v1557
        %v1559 = vpop.f32.mrb[0].mxu0
        %v1560 = vpop.f32.mrb[0].mxu0
        %v1561 = vadd.f32 0.0, %v1560
        %v1562 = vpop.f32.mrb[0].mxu0
        %1563 = vmatprep.mubr.bf16.mxu0 0
        %1564 = vmatmul.mubr.bf16.gmra.mrb[0].mxu0 %v1505
        %v1565 = vpop.f32.mrb[0].mxu0
        %v1566 = vadd.f32 0.0, %v1565
        %v1567 = vpop.f32.mrb[0].mxu0
        %v1568 = vpop.f32.mrb[0].mxu0
        %v1569 = vadd.f32 0.0, %v1568
        %v1570 = vpop.f32.mrb[0].mxu0
        %1571 = vdwg.mxu0
        %v1572 = vld [vmem:[%s3] sm:$0xf]
        %v1573 = vld [vmem:[%s3 + $0x4] sm:$0xf]
        %v1574 = vld [vmem:[%s3 + $0x8] sm:$0xf]
        %v1575 = vld [vmem:[%s3 + $0xc] sm:$0xf]
        %v1576 = vld [vmem:[%s3 + $0x10] sm:$0xf]
        %v1577 = vld [vmem:[%s3 + $0x14] sm:$0xf]
        %1582 = vrot.lane.b32.xlu0 %v1468, 104
        %v1583 = vpop.permute.xlu0 %1582
        %1584 = vrot.lane.b32.xlu0 %v1470, 104
        %v1585 = vpop.permute.xlu0 %1584
        %1586 = vrot.lane.b32.xlu0 %v1472, 104
        %v1587 = vpop.permute.xlu0 %1586
        %1588 = vrot.lane.b32.xlu0 %v1474, 104
        %v1589 = vpop.permute.xlu0 %1588
        %v1596 = vunpack.c.l.b16 %v1572
        %v1597 = vunpack.c.l.b16 %v1573
        %v1598 = vunpack.c.l.b16 %v1574
        %v1599 = vunpack.c.l.b16 %v1575
        %v1600 = vunpack.c.l.b16 %v1576
        %v1601 = vunpack.c.l.b16 %v1577
        %v1602 = vpack.c.b16 %v1597, %v1596
        %v1603 = vpack.c.b16 %v1599, %v1598
        %v1604 = vpack.c.b16 %v1601, %v1600
        %v1609 = vsel %vm1449, %v1583, 0
        %v1612 = vsel %vm1449, %v1585, 0
        %v1615 = vsel %vm1449, %v1587, 0
        %v1618 = vsel %vm1449, %v1589, 0
        %1620 = vmatprep.subr.bf16.mxu0 0
        %1621 = vmatpush1.bf16.msra.mxu0 %v1602
        %1622 = vmatprep.subr.bf16.mxu0 0
        %1623 = vmatpush1.bf16.msra.mxu0 %v1603
        %1624 = vmatprep.subr.bf16.mxu0 0
        %1625 = vmatpush1.bf16.msra.mxu0 %v1604
        %1626 = vmatprep.subr.bf16.mxu0 0
        %1627 = vmatpush1.bf16.msra.mxu0 0
        %1628 = vmatprep.subr.bf16.mxu0 0
        %1629 = vmatpush1.bf16.msra.mxu0 0
        %1630 = vmatprep.subr.bf16.mxu0 0
        %1631 = vmatpush1.bf16.msra.mxu0 0
        %1632 = vmatprep.subr.bf16.mxu0 0
        %1633 = vmatpush1.bf16.msra.mxu0 0
        %1634 = vmatprep.subr.bf16.mxu0 0
        %1635 = vmatpush1.bf16.msra.mxu0 0
        %1636 = vmatprep.subr.bf16.mxu0 0
        %1637 = vmatpush1.bf16.msra.mxu0 0
        %1638 = vmatprep.subr.bf16.mxu0 0
        %1639 = vmatpush1.bf16.msra.mxu0 0
        %1640 = vmatprep.subr.bf16.mxu0 0
        %1641 = vmatpush1.bf16.msra.mxu0 0
        %1642 = vmatprep.subr.bf16.mxu0 0
        %1643 = vmatpush1.bf16.msra.mxu0 0
        %1644 = vmatprep.subr.bf16.mxu0 0
        %1645 = vmatpush1.bf16.msra.mxu0 0
        %1646 = vmatprep.subr.bf16.mxu0 0
        %1647 = vmatpush1.bf16.msra.mxu0 0
        %1648 = vmatprep.subr.bf16.mxu0 0
        %1649 = vmatpush1.bf16.msra.mxu0 0
        %1650 = vmatprep.subr.bf16.mxu0 0
        %1651 = vmatpush1.bf16.msra.mxu0 0
        %1652 = vmatprep.mubr.bf16.mxu0 0
        %1653 = vmatmul.mubr.bf16.gmra.mrb[0].mxu0 %v1609
        %v1654 = vpop.f32.mrb[0].mxu0
        %v1655 = vadd.f32 0.0, %v1654
        %v1656 = vpop.f32.mrb[0].mxu0
        %v1657 = vpop.f32.mrb[0].mxu0
        %v1658 = vadd.f32 0.0, %v1657
        %v1659 = vpop.f32.mrb[0].mxu0
        %1660 = vmatprep.mubr.bf16.mxu0 0
        %1661 = vmatmul.mubr.bf16.gmra.mrb[0].mxu0 %v1612
        %v1662 = vpop.f32.mrb[0].mxu0
        %v1663 = vadd.f32 0.0, %v1662
        %v1664 = vpop.f32.mrb[0].mxu0
        %v1665 = vpop.f32.mrb[0].mxu0
        %v1666 = vadd.f32 0.0, %v1665
        %v1667 = vpop.f32.mrb[0].mxu0
        %1668 = vmatprep.mubr.bf16.mxu0 0
        %1669 = vmatmul.mubr.bf16.gmra.mrb[0].mxu0 %v1615
        %v1670 = vpop.f32.mrb[0].mxu0
        %v1671 = vadd.f32 0.0, %v1670
        %v1672 = vpop.f32.mrb[0].mxu0
        %v1673 = vpop.f32.mrb[0].mxu0
        %v1674 = vadd.f32 0.0, %v1673
        %v1675 = vpop.f32.mrb[0].mxu0
        %1676 = vmatprep.mubr.bf16.mxu0 0
        %1677 = vmatmul.mubr.bf16.gmra.mrb[0].mxu0 %v1618
        %v1678 = vpop.f32.mrb[0].mxu0
        %v1679 = vadd.f32 0.0, %v1678
        %v1680 = vpop.f32.mrb[0].mxu0
        %v1681 = vpop.f32.mrb[0].mxu0
        %v1682 = vadd.f32 0.0, %v1681
        %v1683 = vpop.f32.mrb[0].mxu0
        %1684 = vdwg.mxu0
        %1693 = vrot.lane.b32.xlu0 %v1655, 8
        %v1694 = vpop.permute.xlu0 %1693
        %1695 = vrot.lane.b32.xlu0 %v1658, 8
        %v1696 = vpop.permute.xlu0 %1695
        %1697 = vrot.lane.b32.xlu0 %v1663, 8
        %v1698 = vpop.permute.xlu0 %1697
        %1699 = vrot.lane.b32.xlu0 %v1666, 8
        %v1700 = vpop.permute.xlu0 %1699
        %1701 = vrot.lane.b32.xlu0 %v1671, 8
        %v1702 = vpop.permute.xlu0 %1701
        %1703 = vrot.lane.b32.xlu0 %v1674, 8
        %v1704 = vpop.permute.xlu0 %1703
        %1705 = vrot.lane.b32.xlu0 %v1679, 8
        %v1706 = vpop.permute.xlu0 %1705
        %1707 = vrot.lane.b32.xlu0 %v1682, 8
        %v1708 = vpop.permute.xlu0 %1707
        %v1717 = vsel %vm1400, %v1542, %v1694
        %v1718 = vsel %vm1400, %v1545, %v1696
        %v1719 = vsel %vm1400, %v1550, %v1698
        %v1720 = vsel %vm1400, %v1553, %v1700
        %v1721 = vsel %vm1400, %v1558, %v1702
        %v1722 = vsel %vm1400, %v1561, %v1704
        %v1723 = vsel %vm1400, %v1566, %v1706
        %v1724 = vsel %vm1400, %v1569, %v1708
        %1725 = vst.msk [vmem:[%s270] sm:$0xff] %vm1413, %v1717
        %1726 = vst.msk [vmem:[%s270 + $0x8] sm:$0xff] %vm1413, %v1718
        %1727 = vst.msk [vmem:[%s270 + $0x10] sm:$0xff] %vm1413, %v1719
        %1728 = vst.msk [vmem:[%s270 + $0x18] sm:$0xff] %vm1413, %v1720
        %1729 = vst.msk [vmem:[%s270 + $0x20] sm:$0xff] %vm1413, %v1721
        %1730 = vst.msk [vmem:[%s270 + $0x28] sm:$0xff] %vm1413, %v1722
        %1731 = vst.msk [vmem:[%s270 + $0x30] sm:$0xff] %vm1413, %v1723
        %1732 = vst.msk [vmem:[%s270 + $0x38] sm:$0xff] %vm1413, %v1724
        %v1733 = vsel %vm1413, %v1717, 0.0
        %v1734 = vsel %vm1413, %v1718, 0.0
        %v1735 = vadd.f32 %v1733, %v1734
        %v1736 = vsel %vm1413, %v1719, 0.0
        %v1737 = vadd.f32 %v1735, %v1736
        %v1738 = vsel %vm1413, %v1720, 0.0
        %v1739 = vadd.f32 %v1737, %v1738
        %v1740 = vsel %vm1413, %v1721, 0.0
        %v1741 = vadd.f32 %v1739, %v1740
        %v1742 = vsel %vm1413, %v1722, 0.0
        %v1743 = vadd.f32 %v1741, %v1742
        %v1744 = vsel %vm1413, %v1723, 0.0
        %v1745 = vadd.f32 %v1743, %v1744
        %v1746 = vsel %vm1413, %v1724, 0.0
        %v1747 = vadd.f32 %v1745, %v1746
        %v1748 = vrot.slane %v1747, 4
        %v1749 = vadd.f32 %v1747, %v1748
        %v1750 = vrot.slane %v1749, 2
        %v1751 = vadd.f32 %v1749, %v1750
        %v1752 = vrot.slane %v1751, 1
        %v1753 = vadd.f32 %v1751, %v1752
        %vm1754 = vcmask 122880
        %1755 = vst.msk [vmem:[%s254] sm:$0x1] %vm1754, %v1753
        %v1756 = vmul.f32 %v1717, %v1717
        %v1757 = vmul.f32 %v1718, %v1718
        %v1758 = vmul.f32 %v1719, %v1719
        %v1759 = vmul.f32 %v1720, %v1720
        %v1760 = vmul.f32 %v1721, %v1721
        %v1761 = vmul.f32 %v1722, %v1722
        %v1762 = vmul.f32 %v1723, %v1723
        %v1763 = vmul.f32 %v1724, %v1724
        %v1764 = vsel %vm1413, %v1756, 0.0
        %v1765 = vsel %vm1413, %v1757, 0.0
        %v1766 = vadd.f32 %v1764, %v1765
        %v1767 = vsel %vm1413, %v1758, 0.0
        %v1768 = vadd.f32 %v1766, %v1767
        %v1769 = vsel %vm1413, %v1759, 0.0
        %v1770 = vadd.f32 %v1768, %v1769
        %v1771 = vsel %vm1413, %v1760, 0.0
        %v1772 = vadd.f32 %v1770, %v1771
        %v1773 = vsel %vm1413, %v1761, 0.0
        %v1774 = vadd.f32 %v1772, %v1773
        %v1775 = vsel %vm1413, %v1762, 0.0
        %v1776 = vadd.f32 %v1774, %v1775
        %v1777 = vsel %vm1413, %v1763, 0.0
        %v1778 = vadd.f32 %v1776, %v1777
        %v1779 = vrot.slane %v1778, 4
        %v1780 = vadd.f32 %v1778, %v1779
        %v1781 = vrot.slane %v1780, 2
        %v1782 = vadd.f32 %v1780, %v1781
        %v1783 = vrot.slane %v1782, 1
        %v1784 = vadd.f32 %v1782, %v1783
        %1785 = vst.msk [vmem:[%s260] sm:$0x1] %vm1754, %v1784
        %p1786 = scmp.lt.s32.totalorder %s24, 1
        %s1787 = scalar_select %p1786, %s24, 1
        %s1788 = smul.addr %s1787, 8
        %s1789 = smul.addr %s1788, 8
        %s1790 = scalar_lea.vmem %s4, %s1789
        %s1791 = sand.u32 %s147, 1
        %s1792 = scalar_lea.sflag [#allocation4], %s1791
        %s1793 = sand.u32 %s147, 1
        %s1794 = scalar_lea.vmem [#allocation3], %s1793
        %s1795 = sand.u32 %s173, 1
        %s1796 = scalar_lea.sflag [#allocation6], %s1795
        %s1797 = sand.u32 %s173, 1
        %s1798 = scalar_lea.vmem [#allocation5], %s1797
        // Predicated region
        $region37: #{tpu_custom_call.1} parent=35 // pred_check
          %p1799 = pneg %p131
        $region38: #{tpu_custom_call.1} parent=35 // pred_check_branch
          %1801 = sbr.rel (%p1799) target = $region40
        $region39: #{tpu_custom_call.1} parent=35 // pred_region
          _
        $region40: #{tpu_custom_call.1} parent=35 // pred_fallthru
          _
        // Predicated region
        $region41: #{tpu_custom_call.1} parent=35 // pred_check
          %p1802 = pneg %p157
        $region42: #{tpu_custom_call.1} parent=35 // pred_check_branch
          %1804 = sbr.rel (%p1802) target = $region44
        $region43: #{tpu_custom_call.1} parent=35 // pred_region
          %s1806 = ssub.s32 16, 16
          %1807 = vsyncadd %s1792, %s1806
          %s1808 = smul.addr %s24, 16
          %s1809 = scalar_lea.hbm %s5, %s1808
          %s1811 = sshll.u32 %s1794, 4
          %s1812 = int_to_ptr.vmem [resolvable:$true] %s1811
          %1814 = dma.vmem_to_hbm [thread:$0]  %s1812, 16, %s1809, %s1792
        $region44: #{tpu_custom_call.1} parent=35 // pred_fallthru
          _
        // Predicated region
        $region45: #{tpu_custom_call.1} parent=35 // pred_check
          %p1815 = pneg %p183
        $region46: #{tpu_custom_call.1} parent=35 // pred_check_branch
          %1817 = sbr.rel (%p1815) target = $region48
        $region47: #{tpu_custom_call.1} parent=35 // pred_region
          %s1819 = ssub.s32 16, 16
          %1820 = vsyncadd %s1796, %s1819
          %s1821 = smul.addr %s24, 16
          %s1822 = scalar_lea.hbm %s6, %s1821
          %s1824 = sshll.u32 %s1798, 4
          %s1825 = int_to_ptr.vmem [resolvable:$true] %s1824
          %1827 = dma.vmem_to_hbm [thread:$0]  %s1825, 16, %s1822, %s1796
        $region48: #{tpu_custom_call.1} parent=35 // pred_fallthru
          _
      $region36: #{tpu_custom_call.1} parent=5 // pred_fallthru
        _
      %p1828 = scmp.le.s32.totalorder 2, %s19
      // Predicated region
      $region49: #{tpu_custom_call.1} parent=5 // pred_check
        %p1829 = pneg %p1828
      $region50: #{tpu_custom_call.1} parent=5 // pred_check_branch
        %1831 = sbr.rel (%p1829) target = $region52
      $region51: #{tpu_custom_call.1} parent=5 // pred_region
        %s1832 = ssub.s32 %s19, 2
        // Predicated region
        $region53: #{tpu_custom_call.1} parent=51 // pred_check
          %p1833 = pneg %p137
        $region54: #{tpu_custom_call.1} parent=51 // pred_check_branch
          %1835 = sbr.rel (%p1833) target = $region56
        $region55: #{tpu_custom_call.1} parent=51 // pred_region
          %p1836 = scmp.lt.s32.totalorder %s25, 1
          %s1837 = scalar_select %p1836, %s25, 1
          %s1838 = smul.addr %s1837, 8
          %s1839 = smul.addr %s1838, 8
          %s1840 = scalar_lea.vmem %s4, %s1839
        $region56: #{tpu_custom_call.1} parent=51 // pred_fallthru
          _
        // Predicated region
        $region57: #{tpu_custom_call.1} parent=51 // pred_check
          %p1841 = pneg %p163
        $region58: #{tpu_custom_call.1} parent=51 // pred_check_branch
          %1843 = sbr.rel (%p1841) target = $region60
        $region59: #{tpu_custom_call.1} parent=51 // pred_region
          %s1844 = sand.u32 %s148, 1
          %s1845 = scalar_lea.sflag [#allocation4], %s1844
          %s1846 = sand.u32 %s148, 1
          %s1847 = scalar_lea.vmem [#allocation3], %s1846
          %1848 = dma.done %s1845, 16
        $region60: #{tpu_custom_call.1} parent=51 // pred_fallthru
          _
        // Predicated region
        $region61: #{tpu_custom_call.1} parent=51 // pred_check
          %p1849 = pneg %p189
        $region62: #{tpu_custom_call.1} parent=51 // pred_check_branch
          %1851 = sbr.rel (%p1849) target = $region64
        $region63: #{tpu_custom_call.1} parent=51 // pred_region
          %s1852 = sand.u32 %s174, 1
          %s1853 = scalar_lea.sflag [#allocation6], %s1852
          %s1854 = sand.u32 %s174, 1
          %s1855 = scalar_lea.vmem [#allocation5], %s1854
          %1856 = dma.done %s1853, 16
        $region64: #{tpu_custom_call.1} parent=51 // pred_fallthru
          _
      $region52: #{tpu_custom_call.1} parent=5 // pred_fallthru
        _
    $region6: #{tpu_custom_call.1} parent=1 // loop_footer
      %s23 = sadd.s32 1, %s19
    $region7: #{tpu_custom_call.1} parent=1 // loop_footer_branch
      %18 = sbr.rel target = $region3
    $region8: #{tpu_custom_call.1} parent=1 // loop_exit
      _
    %1857 = vsyncpa [#allocation4], 1
    %s1858 = scalar_lea.sflag [#allocation4], 1
    %1859 = vsyncpa %s1858, 1
    %1860 = vsyncpa [#allocation6], 1
    %s1861 = scalar_lea.sflag [#allocation6], 1
    %1862 = vsyncpa %s1861, 1

</llo_original>
